<compile_context>
chip_gen: v6e
topology: v6e:2x2x1
jax: 0.10.0
libtpu: 0.0.40
codegen_flags: <defaults>
</compile_context>

<pallas_src>
import functools

import jax
import jax.numpy as jnp
import numpy as np
from jax.experimental import pallas as pl
from jax.experimental.pallas import tpu as pltpu

EPS = 1e-5                       # nn.LayerNorm and nn.GroupNorm default eps
VMEM_LIMIT = 64 * 1024 * 1024    # explicit scoped-VMEM budget (all gens)


def _ln(x, w, b):
    """f32 LayerNorm over the last axis (used inside kernels)."""
    m = jnp.mean(x, axis=-1, keepdims=True)
    v = jnp.mean((x - m) ** 2, axis=-1, keepdims=True)
    return (x - m) * jax.lax.rsqrt(v + EPS) * w + b


def decay_tensors(decay_speed, faaaa, T):
    """w / wk / wb / ws of _forward_wkbs_chunk, built once per call.

    Returns kernel-layout tensors:
      wmat  (H, T, T) f32   lower-triangular decay + diag bonus
      wkd_t (T, H)    f32   wd^(T-1-t)
      wbb_t (T, H)    f32   wd^t
      ws_h  (1, H)    f32   wd^T
    """
    wd = jnp.exp(-jnp.exp(decay_speed))                          # (H,)
    i = jnp.arange(T)[:, None]
    j = jnp.arange(T)[None, :]
    e = jnp.maximum(i - j - 1, 0).astype(jnp.float32)
    base = wd[:, None, None] ** e[None]
    wmat = jnp.where((i > j)[None], base, 0.0)
    wmat = wmat + jnp.where((i == j)[None], faaaa[:, None, None], 0.0)
    tvec = jnp.arange(T, dtype=jnp.float32)
    wkd_t = wd[None, :] ** (T - 1.0 - tvec)[:, None]             # (T, H)
    wbb_t = wd[None, :] ** tvec[:, None]                         # (T, H)
    ws_h = (wd ** T)[None, :]                                    # (1, H)
    return wmat, wkd_t, wbb_t, ws_h


# --------------------------------------------------------------------------
# Fused RWKV_TimeMix kernel:
#   [ln0] + ln1 + token-shift + projections + wkv + GroupNorm + out-proj
#   + residual.  One grid step per batch element.
# --------------------------------------------------------------------------
def timemix_kernel(apply_ln0,
                   x_ref, shift_ref, s_ref, mix_ref,
                   ln0w_ref, ln0b_ref, ln1w_ref, ln1b_ref,
                   wr_ref, wk_ref, wv_ref, wg_ref, wo_ref,
                   lnxw_ref, lnxb_ref,
                   wmat_ref, wkd_ref, wbb_ref, ws_ref,
                   out_ref, sout_ref, xlast_ref,
                   normg_ref):
    bf = jnp.bfloat16
    _, T, C = x_ref.shape
    _, H, S, _ = s_ref.shape

    x = x_ref[0]                                       # (T, C) f32 residual
    if apply_ln0:                                      # static flag: layer 0
        x = _ln(x, ln0w_ref[...], ln0b_ref[...])

    # ---- ln1 (fused, f32 stats) ----
    x1 = _ln(x, ln1w_ref[...], ln1b_ref[...])
    xlast_ref[0] = x1[T - 1:T, :]                      # new att shift state

    # ---- token shift on the XLU (f32), row 0 from the carried shift state --
    row0 = jax.lax.broadcasted_iota(jnp.int32, (T, 1), 0) == 0
    rolled = pltpu.roll(x1, shift=1, axis=0)
    xx = jnp.where(row0, shift_ref[0], rolled)

    d = x1 - xx                                        # hoisted once
    xk = xx + mix_ref[0] * d
    xv = xx + mix_ref[1] * d
    xr = xx + mix_ref[2] * d
    xg = xx + mix_ref[3] * d

    # ---- fused full-width projections (bf16 MXU, f32 accumulate) ----
    r = jnp.dot(xr.astype(bf), wr_ref[...], preferred_element_type=jnp.float32)
    k = jnp.dot(xk.astype(bf), wk_ref[...], preferred_element_type=jnp.float32)
    v = jnp.dot(xv.astype(bf), wv_ref[...], preferred_element_type=jnp.float32)
    gp = jnp.dot(xg.astype(bf), wg_ref[...], preferred_element_type=jnp.float32)
    g = gp * jax.nn.sigmoid(gp)                        # SiLU gate, (T, D) f32

    # ---- per-head RWKV-5 linear attention (decay tensors are precomputed
    #      once per call and VMEM-resident across the whole B grid) ----
    # TODO(synk): process heads in pairs so the three S-wide dots use >=128
    #             MXU output columns on v6e/v7x.
    for h in range(H):
        sl = slice(h * S, (h + 1) * S)
        r_h = r[:, sl].astype(bf)                      # (T, S)
        k_h = k[:, sl]                                 # (T, S) f32
        v_h = v[:, sl].astype(bf)                      # (T, S)
        g_h = g[:, sl]                                 # (T, S) f32
        wmat_h = wmat_ref[h]                           # (T, T) f32
        wkd_h = wkd_ref[:, h:h + 1]                    # (T, 1)
        wbb_h = wbb_ref[:, h:h + 1]                    # (T, 1)
        ws_h = ws_ref[:, h:h + 1]                      # (1, 1)
        s_h = s_ref[0, h]                              # (S, S) f32 wkv state

        rk = jax.lax.dot_general(                      # r @ k^T, (T, T)
            r_h, k_h.astype(bf), (((1,), (1,)), ((), ())),
            preferred_element_type=jnp.float32)
        y = jnp.dot((rk * wmat_h).astype(bf), v_h,
                    preferred_element_type=jnp.float32)
        y = y + jnp.dot(r_h, s_h.astype(bf),
                        preferred_element_type=jnp.float32) * wbb_h
        s_new = ws_h * s_h + jax.lax.dot_general(      # (k*wkd)^T @ v, f32
            (k_h * wkd_h).astype(bf), v_h, (((0,), (0,)), ((), ())),
            preferred_element_type=jnp.float32)
        sout_ref[0, h] = s_new

        # GroupNorm(n_head): each head is one group, f32 stats
        yn = y * 0.125
        m = jnp.mean(yn, axis=-1, keepdims=True)
        va = jnp.mean((yn - m) ** 2, axis=-1, keepdims=True)
        norm = (yn - m) * jax.lax.rsqrt(va + EPS) * lnxw_ref[h] + lnxb_ref[h]
        normg_ref[:, sl] = norm * g_h                  # bounded live range

    # single lane-dense (T, D) slab -> one output projection, fused residual
    att = jnp.dot(normg_ref[...].astype(bf), wo_ref[...],
                  preferred_element_type=jnp.float32)
    out_ref[0] = x + att


def timemix(x, att_shift, wkv_state, p, *, apply_ln0):
    B, T, C = x.shape
    H, S = p['n_head'], p['head_size']
    D = H * S
    # Decay tensors built ONCE per call (not per batch element).
    wmat, wkd_t, wbb_t, ws_h = decay_tensors(p['decay_speed'], p['time_faaaa'], T)
    kernel = functools.partial(timemix_kernel, apply_ln0)
    # TODO(synk): for C >= 4096 on v7x (64 MiB VMEM), single-buffer / stream
    #             the (C,D) weight tiles instead of keeping them resident.
    return pl.pallas_call(
        kernel,
        grid=(B,),
        in_specs=[
            pl.BlockSpec((1, T, C), lambda b: (b, 0, 0)),        # x (residual)
            pl.BlockSpec((1, 1, C), lambda b: (b, 0, 0)),        # att shift
            pl.BlockSpec((1, H, S, S), lambda b: (b, 0, 0, 0)),  # wkv state
            pl.BlockSpec((4, 1, C), lambda b: (0, 0, 0)),        # mix masks
            pl.BlockSpec((1, C), lambda b: (0, 0)),              # ln0_w
            pl.BlockSpec((1, C), lambda b: (0, 0)),              # ln0_b
            pl.BlockSpec((1, C), lambda b: (0, 0)),              # ln1_w
            pl.BlockSpec((1, C), lambda b: (0, 0)),              # ln1_b
            pl.BlockSpec((C, D), lambda b: (0, 0)),              # wr (bf16)
            pl.BlockSpec((C, D), lambda b: (0, 0)),              # wk (bf16)
            pl.BlockSpec((C, D), lambda b: (0, 0)),              # wv (bf16)
            pl.BlockSpec((C, D), lambda b: (0, 0)),              # wg (bf16)
            pl.BlockSpec((D, C), lambda b: (0, 0)),              # wo (bf16)
            pl.BlockSpec((H, 1, S), lambda b: (0, 0, 0)),        # ln_x weight
            pl.BlockSpec((H, 1, S), lambda b: (0, 0, 0)),        # ln_x bias
            pl.BlockSpec((H, T, T), lambda b: (0, 0, 0)),        # wmat (f32)
            pl.BlockSpec((T, H), lambda b: (0, 0)),              # wkd
            pl.BlockSpec((T, H), lambda b: (0, 0)),              # wbb
            pl.BlockSpec((1, H), lambda b: (0, 0)),              # ws
        ],
        out_specs=(pl.BlockSpec((1, T, C), lambda b: (b, 0, 0)),
                   pl.BlockSpec((1, H, S, S), lambda b: (b, 0, 0, 0)),
                   pl.BlockSpec((1, 1, C), lambda b: (b, 0, 0))),
        out_shape=(jax.ShapeDtypeStruct((B, T, C), jnp.float32),
                   jax.ShapeDtypeStruct((B, H, S, S), jnp.float32),
                   jax.ShapeDtypeStruct((B, 1, C), jnp.float32)),
        scratch_shapes=[pltpu.VMEM((T, D), jnp.float32)],        # normg slab
        input_output_aliases={2: 1},                             # wkv in-place
        compiler_params=pltpu.CompilerParams(
            dimension_semantics=("parallel",),
            vmem_limit_bytes=VMEM_LIMIT),
    )(x, att_shift, wkv_state, p['att_mix'],
      p['ln0_w'].reshape(1, C), p['ln0_b'].reshape(1, C),
      p['ln1_w'].reshape(1, C), p['ln1_b'].reshape(1, C),
      p['wr'], p['wk'], p['wv'], p['wg'], p['wo'],
      p['lnx_w_h'], p['lnx_b_h'],
      wmat, wkd_t, wbb_t, ws_h)


# --------------------------------------------------------------------------
# Fused RWKV_ChannelMix kernel: ln2 + token-shift + FFN + residual
# --------------------------------------------------------------------------
def channelmix_kernel(x_ref, shift_ref, ln2w_ref, ln2b_ref, mix_ref,
                      wfk_ref, wfv_ref, wfr_ref, out_ref, xlast_ref):
    bf = jnp.bfloat16
    _, T, C = x_ref.shape

    x = x_ref[0]                                       # (T, C) f32 residual
    x2 = _ln(x, ln2w_ref[...], ln2b_ref[...])
    xlast_ref[0] = x2[T - 1:T, :]                      # new ffn shift state

    # token shift on the XLU (f32), row 0 from the carried shift state
    row0 = jax.lax.broadcasted_iota(jnp.int32, (T, 1), 0) == 0
    rolled = pltpu.roll(x2, shift=1, axis=0)
    xx = jnp.where(row0, shift_ref[0], rolled)

    d = x2 - xx
    xk = (xx + mix_ref[0] * d).astype(bf)
    xr = (xx + mix_ref[1] * d).astype(bf)

    k = jnp.dot(xk, wfk_ref[...], preferred_element_type=jnp.float32)
    k = jnp.maximum(k, 0.0)
    k = k * k                                          # relu(k)^2
    kv = jnp.dot(k.astype(bf), wfv_ref[...], preferred_element_type=jnp.float32)
    rr = jax.nn.sigmoid(
        jnp.dot(xr, wfr_ref[...], preferred_element_type=jnp.float32))
    out_ref[0] = x + rr * kv                           # residual fused


def channelmix(x, ffn_shift, p):
    B, T, C = x.shape
    F = p['wfk'].shape[1]
    return pl.pallas_call(
        channelmix_kernel,
        grid=(B,),
        in_specs=[
            pl.BlockSpec((1, T, C), lambda b: (b, 0, 0)),        # x (residual)
            pl.BlockSpec((1, 1, C), lambda b: (b, 0, 0)),        # ffn shift
            pl.BlockSpec((1, C), lambda b: (0, 0)),              # ln2_w
            pl.BlockSpec((1, C), lambda b: (0, 0)),              # ln2_b
            pl.BlockSpec((2, 1, C), lambda b: (0, 0, 0)),        # mix masks
            pl.BlockSpec((C, F), lambda b: (0, 0)),              # wfk (bf16)
            pl.BlockSpec((F, C), lambda b: (0, 0)),              # wfv (bf16)
            pl.BlockSpec((C, C), lambda b: (0, 0)),              # wfr (bf16)
        ],
        out_specs=(pl.BlockSpec((1, T, C), lambda b: (b, 0, 0)),
                   pl.BlockSpec((1, 1, C), lambda b: (b, 0, 0))),
        out_shape=(jax.ShapeDtypeStruct((B, T, C), jnp.float32),
                   jax.ShapeDtypeStruct((B, 1, C), jnp.float32)),
        compiler_params=pltpu.CompilerParams(
            dimension_semantics=("parallel",),
            vmem_limit_bytes=VMEM_LIMIT),
    )(x, ffn_shift, p['ln2_w'].reshape(1, C), p['ln2_b'].reshape(1, C),
      p['ffn_mix'], p['wfk'], p['wfv'], p['wfr'])


# --------------------------------------------------------------------------
# Block wrapper (ln0 is fused into the TimeMix kernel for layer 0)
# --------------------------------------------------------------------------
def block_forward(x, att_shift, wkv_state, ffn_shift, p):
    # single RWKV chunk (chunk_len = 512 in the reference module)
    assert x.shape[1] <= 512
    # TODO(synk): dropout > 0 (drop0/drop1) not implemented — training-only.
    x, wkv_new, att_shift_new = timemix(
        x, att_shift[:, None, :], wkv_state, p,
        apply_ln0=(p['layer_id'] == 0))
    x, ffn_shift_new = channelmix(x, ffn_shift[:, None, :], p)
    return x, (att_shift_new[:, 0, :], wkv_new), ffn_shift_new[:, 0, :]


# --------------------------------------------------------------------------
# Deterministic parameter construction (mirrors module __init__)
# --------------------------------------------------------------------------
def make_params(key, layer_id, n_layer, n_embd, n_head, head_size, dim_ffn):
    C, H, S, Fd = n_embd, n_head, head_size, dim_ffn
    D = H * S                                          # dim_att
    r0 = layer_id / (n_layer - 1)
    r1 = 1.0 - layer_id / n_layer
    ddd = jnp.arange(C, dtype=jnp.float32) / C
    ks = jax.random.split(key, 8)

    def lin(k, o, i, scale=0.1):                       # torch layout (out, in)
        w = jax.random.normal(k, (o, i), jnp.float32) * scale
        # weights are effectively bf16 (kernel feeds bf16 to the MXU); keep the
        # f32 reference copy numerically identical
        return w.astype(jnp.bfloat16).astype(jnp.float32)

    W_r = lin(ks[0], D, C); W_k = lin(ks[1], D, C); W_v = lin(ks[2], D, C)
    W_g = lin(ks[3], D, C); W_o = lin(ks[4], C, D)
    W_fk = lin(ks[5], Fd, C); W_fr = lin(ks[6], C, C); W_fv = lin(ks[7], C, Fd)

    decay_speed = jnp.array(
        [-8.0 + 7.0 * (h / (H - 1)) ** (0.7 + 1.3 * r0) for h in range(H)],
        jnp.float32)
    time_faaaa = jnp.full((H,), 0.05, jnp.float32)
    lnx_w = jnp.ones((D,), jnp.float32)
    lnx_b = jnp.zeros((D,), jnp.float32)

    mk = (ddd ** r1).reshape(1, 1, C)
    mv = (ddd ** r1 + 0.3 * r0).reshape(1, 1, C)
    mr = (ddd ** (0.5 * r1)).reshape(1, 1, C)
    mg = (ddd ** (0.5 * r1)).reshape(1, 1, C)
    fmk = (ddd ** r1).reshape(1, 1, C)
    fmr = (ddd ** r1).reshape(1, 1, C)

    bf = jnp.bfloat16
    return dict(
        layer_id=layer_id, n_head=H, head_size=S,
        ln0_w=jnp.ones((C,), jnp.float32), ln0_b=jnp.zeros((C,), jnp.float32),
        ln1_w=jnp.ones((C,), jnp.float32), ln1_b=jnp.zeros((C,), jnp.float32),
        ln2_w=jnp.ones((C,), jnp.float32), ln2_b=jnp.zeros((C,), jnp.float32),
        # reference (torch-layout, f32) copies
        att_mk=mk, att_mv=mv, att_mr=mr, att_mg=mg, ffn_mk=fmk, ffn_mr=fmr,
        W_r=W_r, W_k=W_k, W_v=W_v, W_g=W_g, W_o=W_o,
        W_fk=W_fk, W_fr=W_fr, W_fv=W_fv,
        lnx_w=lnx_w, lnx_b=lnx_b,
        decay_speed=decay_speed, time_faaaa=time_faaaa,
        # kernel-layout tensors
        att_mix=jnp.concatenate([mk, mv, mr, mg], axis=0),   # (4, 1, C)
        ffn_mix=jnp.concatenate([fmk, fmr], axis=0),         # (2, 1, C)
        wr=W_r.T.astype(bf), wk=W_k.T.astype(bf),
        wv=W_v.T.astype(bf), wg=W_g.T.astype(bf),
        wo=W_o.T.astype(bf),
        wfk=W_fk.T.astype(bf), wfv=W_fv.T.astype(bf), wfr=W_fr.T.astype(bf),
        lnx_w_h=lnx_w.reshape(H, 1, S), lnx_b_h=lnx_b.reshape(H, 1, S),
    )


# --------------------------------------------------------------------------
# Pure-JAX reference (mirrors the PyTorch math) for verification
# --------------------------------------------------------------------------
def reference_block(x, att_shift, wkv_state, ffn_shift, p):
    def ln(z, w, b):
        m = z.mean(-1, keepdims=True)
        v = ((z - m) ** 2).mean(-1, keepdims=True)
        return (z - m) / jnp.sqrt(v + EPS) * w + b

    B, T, C = x.shape
    H, S = p['n_head'], p['head_size']
    wmat, wkd_t, wbb_t, ws_h = decay_tensors(p['decay_speed'], p['time_faaaa'], T)
    wkd = wkd_t.T[:, :, None]       # (H, T, 1)
    wbb = wbb_t.T[:, :, None]       # (H, T, 1)
    ws = ws_h[0][:, None, None]     # (H, 1, 1)

    if p['layer_id'] == 0:
        x = ln(x, p['ln0_w'], p['ln0_b'])
    x1 = ln(x, p['ln1_w'], p['ln1_b'])
    xx = jnp.concatenate([att_shift[:, None], x1[:, :-1]], axis=1)
    mk, mv, mr, mg = p['att_mk'], p['att_mv'], p['att_mr'], p['att_mg']
    xk = x1 * mk + xx * (1 - mk); xv = x1 * mv + xx * (1 - mv)
    xr = x1 * mr + xx * (1 - mr); xg = x1 * mg + xx * (1 - mg)
    r = (xr @ p['W_r'].T).reshape(B, T, H, S).transpose(0, 2, 1, 3)
    k = (xk @ p['W_k'].T).reshape(B, T, H, S).transpose(0, 2, 1, 3)
    v = (xv @ p['W_v'].T).reshape(B, T, H, S).transpose(0, 2, 1, 3)
    gl = xg @ p['W_g'].T
    g = gl * jax.nn.sigmoid(gl)
    s = wkv_state
    rk = jnp.einsum('bhts,bhus->bhtu', r, k)
    y = jnp.einsum('bhtu,bhus->bhts', rk * wmat[None], v)
    y = y + jnp.einsum('bhts,bhsd->bhtd', r, s) * wbb[None]
    s_new = ws[None] * s + jnp.einsum('bhts,bhtd->bhsd', k * wkd[None], v)
    y = y.transpose(0, 2, 1, 3).reshape(B * T, H * S) / 8.0
    yg = y.reshape(B * T, H, S)
    m = yg.mean(-1, keepdims=True)
    var = ((yg - m) ** 2).mean(-1, keepdims=True)
    yn = ((yg - m) / jnp.sqrt(var + EPS)).reshape(B * T, H * S) * p['lnx_w'] + p['lnx_b']
    att_out = (yn.reshape(B, T, H * S) * g) @ p['W_o'].T
    x = x + att_out
    x2 = ln(x, p['ln2_w'], p['ln2_b'])
    xxf = jnp.concatenate([ffn_shift[:, None], x2[:, :-1]], axis=1)
    fmk, fmr = p['ffn_mk'], p['ffn_mr']
    xk2 = x2 * fmk + xxf * (1 - fmk)
    xr2 = x2 * fmr + xxf * (1 - fmr)
    kk = jnp.maximum(xk2 @ p['W_fk'].T, 0.0) ** 2
    kv = kk @ p['W_fv'].T
    ffn_out = jax.nn.sigmoid(xr2 @ p['W_fr'].T) * kv
    x = x + ffn_out
    return x, (x1[:, -1], s_new), x2[:, -1]


# --------------------------------------------------------------------------
if __name__ == "__main__":
    layer_id, n_layer = 0, 4
    n_embd, n_head, head_size = 32, 2, 16
    dim_att, dim_ffn = n_head * head_size, 64
    dropout = 0.0
    B, T = 2, 8

    key = jax.random.PRNGKey(0)
    kp, kx, ks1, ks2, ks3 = jax.random.split(key, 5)
    p = make_params(kp, layer_id, n_layer, n_embd, n_head, head_size, dim_ffn)

    x = jax.random.normal(kx, (B, T, n_embd), jnp.float32)
    att_shift = jax.random.normal(ks1, (B, n_embd), jnp.float32) * 0.1
    wkv_state = jax.random.normal(
        ks2, (B, n_head, head_size, head_size), jnp.float32) * 0.1
    ffn_shift = jax.random.normal(ks3, (B, n_embd), jnp.float32) * 0.1

    # Compute the pure-JAX reference first: the kernel aliases the wkv state
    # output onto its input, so don't read the input state after the call.
    with jax.default_matmul_precision('highest'):
        ref_out, (ref_att_shift, ref_wkv), ref_ffn_shift = reference_block(
            x, att_shift, wkv_state, ffn_shift, p)
        ref_out = jax.block_until_ready(ref_out)

    out, (new_att_shift, new_wkv), new_ffn_shift = block_forward(
        x, att_shift, wkv_state, ffn_shift, p)
    jax.block_until_ready(out)
    jax.block_until_ready(new_wkv)

    assert np.allclose(np.asarray(out), np.asarray(ref_out), atol=5e-2, rtol=5e-2)
    assert np.allclose(np.asarray(new_wkv), np.asarray(ref_wkv), atol=5e-2, rtol=5e-2)
    assert np.allclose(np.asarray(new_att_shift), np.asarray(ref_att_shift),
                       atol=5e-2, rtol=5e-2)
    assert np.allclose(np.asarray(new_ffn_shift), np.asarray(ref_ffn_shift),
                       atol=5e-2, rtol=5e-2)
    print("KERNEL_OK")
</pallas_src>

<mosaic_0001>
module attributes {stable_mosaic.version = 11 : i64} {
  func.func @timemix_kernel(%arg0: i32, %arg1: memref<1x8x32xf32, #tpu.memory_space<vmem>>, %arg2: memref<1x1x32xf32, #tpu.memory_space<vmem>>, %arg3: memref<1x2x16x16xf32, #tpu.memory_space<vmem>>, %arg4: memref<4x1x32xf32, #tpu.memory_space<vmem>>, %arg5: memref<1x32xf32, #tpu.memory_space<vmem>>, %arg6: memref<1x32xf32, #tpu.memory_space<vmem>>, %arg7: memref<1x32xf32, #tpu.memory_space<vmem>>, %arg8: memref<1x32xf32, #tpu.memory_space<vmem>>, %arg9: memref<32x32xbf16, #tpu.memory_space<vmem>>, %arg10: memref<32x32xbf16, #tpu.memory_space<vmem>>, %arg11: memref<32x32xbf16, #tpu.memory_space<vmem>>, %arg12: memref<32x32xbf16, #tpu.memory_space<vmem>>, %arg13: memref<32x32xbf16, #tpu.memory_space<vmem>>, %arg14: memref<2x1x16xf32, #tpu.memory_space<vmem>>, %arg15: memref<2x1x16xf32, #tpu.memory_space<vmem>>, %arg16: memref<2x8x8xf32, #tpu.memory_space<vmem>>, %arg17: memref<8x2xf32, #tpu.memory_space<vmem>>, %arg18: memref<8x2xf32, #tpu.memory_space<vmem>>, %arg19: memref<1x2xf32, #tpu.memory_space<vmem>>, %arg20: memref<1x8x32xf32, #tpu.memory_space<vmem>>, %arg21: memref<1x2x16x16xf32, #tpu.memory_space<vmem>>, %arg22: memref<1x1x32xf32, #tpu.memory_space<vmem>>, %arg23: memref<8x32xf32, #tpu.memory_space<vmem>>) attributes {dimension_semantics = [#tpu.dimension_semantics<parallel>], iteration_bounds = array<i64: 2>, scalar_prefetch = 0 : i64, scratch_operands = 1 : i64, tpu.core_type = #tpu.core_type<tc>, window_params = [{transform_indices = @transform_0, window_bounds = array<i64: 1, 8, 32>}, {transform_indices = @transform_1, window_bounds = array<i64: 1, 1, 32>}, {transform_indices = @transform_2, window_bounds = array<i64: 1, 2, 16, 16>}, {pipeline_mode = #tpu.pipeline_mode<synchronous>, transform_indices = @transform_3, window_bounds = array<i64: 4, 1, 32>}, {pipeline_mode = #tpu.pipeline_mode<synchronous>, transform_indices = @transform_4, window_bounds = array<i64: 1, 32>}, {pipeline_mode = #tpu.pipeline_mode<synchronous>, transform_indices = @transform_5, window_bounds = array<i64: 1, 32>}, {pipeline_mode = #tpu.pipeline_mode<synchronous>, transform_indices = @transform_6, window_bounds = array<i64: 1, 32>}, {pipeline_mode = #tpu.pipeline_mode<synchronous>, transform_indices = @transform_7, window_bounds = array<i64: 1, 32>}, {pipeline_mode = #tpu.pipeline_mode<synchronous>, transform_indices = @transform_8, window_bounds = array<i64: 32, 32>}, {pipeline_mode = #tpu.pipeline_mode<synchronous>, transform_indices = @transform_9, window_bounds = array<i64: 32, 32>}, {pipeline_mode = #tpu.pipeline_mode<synchronous>, transform_indices = @transform_10, window_bounds = array<i64: 32, 32>}, {pipeline_mode = #tpu.pipeline_mode<synchronous>, transform_indices = @transform_11, window_bounds = array<i64: 32, 32>}, {pipeline_mode = #tpu.pipeline_mode<synchronous>, transform_indices = @transform_12, window_bounds = array<i64: 32, 32>}, {pipeline_mode = #tpu.pipeline_mode<synchronous>, transform_indices = @transform_13, window_bounds = array<i64: 2, 1, 16>}, {pipeline_mode = #tpu.pipeline_mode<synchronous>, transform_indices = @transform_14, window_bounds = array<i64: 2, 1, 16>}, {pipeline_mode = #tpu.pipeline_mode<synchronous>, transform_indices = @transform_15, window_bounds = array<i64: 2, 8, 8>}, {pipeline_mode = #tpu.pipeline_mode<synchronous>, transform_indices = @transform_16, window_bounds = array<i64: 8, 2>}, {pipeline_mode = #tpu.pipeline_mode<synchronous>, transform_indices = @transform_17, window_bounds = array<i64: 8, 2>}, {pipeline_mode = #tpu.pipeline_mode<synchronous>, transform_indices = @transform_18, window_bounds = array<i64: 1, 2>}, {transform_indices = @transform_19, window_bounds = array<i64: 1, 8, 32>}, {transform_indices = @transform_20, window_bounds = array<i64: 1, 2, 16, 16>}, {transform_indices = @transform_21, window_bounds = array<i64: 1, 1, 32>}]} {
    %c0 = arith.constant 0 : index
    %c0_0 = arith.constant 0 : index
    %c0_1 = arith.constant 0 : index
    %0 = vector.load %arg1[%c0, %c0_0, %c0_1] : memref<1x8x32xf32, #tpu.memory_space<vmem>>, vector<1x8x32xf32>
    %1 = vector.shape_cast %0 : vector<1x8x32xf32> to vector<8x32xf32>
    %c0_2 = arith.constant 0 : index
    %c0_3 = arith.constant 0 : index
    %2 = vector.load %arg5[%c0_2, %c0_3] : memref<1x32xf32, #tpu.memory_space<vmem>>, vector<1x32xf32>
    %c0_4 = arith.constant 0 : index
    %c0_5 = arith.constant 0 : index
    %3 = vector.load %arg6[%c0_4, %c0_5] : memref<1x32xf32, #tpu.memory_space<vmem>>, vector<1x32xf32>
    %cst = arith.constant dense<0.000000e+00> : vector<8xf32>
    %4 = vector.multi_reduction <add>, %1, %cst [1] : vector<8x32xf32> to vector<8xf32>
    %5 = vector.shape_cast %4 : vector<8xf32> to vector<8x1xf32>
    %cst_6 = arith.constant 3.200000e+01 : f32
    %6 = vector.broadcast %cst_6 : f32 to vector<8x1xf32>
    %7 = arith.divf %5, %6 : vector<8x1xf32>
    %8 = vector.broadcast %7 : vector<8x1xf32> to vector<8x32xf32>
    %9 = arith.subf %1, %8 : vector<8x32xf32>
    %10 = arith.mulf %9, %9 : vector<8x32xf32>
    %cst_7 = arith.constant dense<0.000000e+00> : vector<8xf32>
    %11 = vector.multi_reduction <add>, %10, %cst_7 [1] : vector<8x32xf32> to vector<8xf32>
    %12 = vector.shape_cast %11 : vector<8xf32> to vector<8x1xf32>
    %cst_8 = arith.constant 3.200000e+01 : f32
    %13 = vector.broadcast %cst_8 : f32 to vector<8x1xf32>
    %14 = arith.divf %12, %13 : vector<8x1xf32>
    %15 = vector.broadcast %7 : vector<8x1xf32> to vector<8x32xf32>
    %16 = arith.subf %1, %15 : vector<8x32xf32>
    %cst_9 = arith.constant 9.99999974E-6 : f32
    %17 = vector.broadcast %cst_9 : f32 to vector<8x1xf32>
    %18 = arith.addf %14, %17 : vector<8x1xf32>
    %19 = math.rsqrt %18 : vector<8x1xf32>
    %20 = vector.broadcast %19 : vector<8x1xf32> to vector<8x32xf32>
    %21 = arith.mulf %16, %20 : vector<8x32xf32>
    %22 = vector.broadcast %2 : vector<1x32xf32> to vector<8x32xf32>
    %23 = arith.mulf %21, %22 : vector<8x32xf32>
    %24 = vector.broadcast %3 : vector<1x32xf32> to vector<8x32xf32>
    %25 = arith.addf %23, %24 : vector<8x32xf32>
    %c0_10 = arith.constant 0 : index
    %c0_11 = arith.constant 0 : index
    %26 = vector.load %arg7[%c0_10, %c0_11] : memref<1x32xf32, #tpu.memory_space<vmem>>, vector<1x32xf32>
    %c0_12 = arith.constant 0 : index
    %c0_13 = arith.constant 0 : index
    %27 = vector.load %arg8[%c0_12, %c0_13] : memref<1x32xf32, #tpu.memory_space<vmem>>, vector<1x32xf32>
    %cst_14 = arith.constant dense<0.000000e+00> : vector<8xf32>
    %28 = vector.multi_reduction <add>, %25, %cst_14 [1] : vector<8x32xf32> to vector<8xf32>
    %29 = vector.shape_cast %28 : vector<8xf32> to vector<8x1xf32>
    %cst_15 = arith.constant 3.200000e+01 : f32
    %30 = vector.broadcast %cst_15 : f32 to vector<8x1xf32>
    %31 = arith.divf %29, %30 : vector<8x1xf32>
    %32 = vector.broadcast %31 : vector<8x1xf32> to vector<8x32xf32>
    %33 = arith.subf %25, %32 : vector<8x32xf32>
    %34 = arith.mulf %33, %33 : vector<8x32xf32>
    %cst_16 = arith.constant dense<0.000000e+00> : vector<8xf32>
    %35 = vector.multi_reduction <add>, %34, %cst_16 [1] : vector<8x32xf32> to vector<8xf32>
    %36 = vector.shape_cast %35 : vector<8xf32> to vector<8x1xf32>
    %cst_17 = arith.constant 3.200000e+01 : f32
    %37 = vector.broadcast %cst_17 : f32 to vector<8x1xf32>
    %38 = arith.divf %36, %37 : vector<8x1xf32>
    %39 = vector.broadcast %31 : vector<8x1xf32> to vector<8x32xf32>
    %40 = arith.subf %25, %39 : vector<8x32xf32>
    %cst_18 = arith.constant 9.99999974E-6 : f32
    %41 = vector.broadcast %cst_18 : f32 to vector<8x1xf32>
    %42 = arith.addf %38, %41 : vector<8x1xf32>
    %43 = math.rsqrt %42 : vector<8x1xf32>
    %44 = vector.broadcast %43 : vector<8x1xf32> to vector<8x32xf32>
    %45 = arith.mulf %40, %44 : vector<8x32xf32>
    %46 = vector.broadcast %26 : vector<1x32xf32> to vector<8x32xf32>
    %47 = arith.mulf %45, %46 : vector<8x32xf32>
    %48 = vector.broadcast %27 : vector<1x32xf32> to vector<8x32xf32>
    %49 = arith.addf %47, %48 : vector<8x32xf32>
    %50 = vector.extract_strided_slice %49 {offsets = [7, 0], sizes = [1, 32], strides = [1, 1]} : vector<8x32xf32> to vector<1x32xf32>
    %c0_19 = arith.constant 0 : index
    %c0_20 = arith.constant 0 : index
    %c0_21 = arith.constant 0 : index
    %51 = vector.load %arg22[%c0_19, %c0_20, %c0_21] : memref<1x1x32xf32, #tpu.memory_space<vmem>>, vector<1x1x32xf32>
    %52 = vector.shape_cast %51 : vector<1x1x32xf32> to vector<1x32xf32>
    %53 = vector.shape_cast %50 : vector<1x32xf32> to vector<1x1x32xf32>
    tpu.vector_store %arg22[%c0_19, %c0_20, %c0_21], %53 {strides = array<i32>} : memref<1x1x32xf32, #tpu.memory_space<vmem>>, vector<1x1x32xf32>,
    %54 = tpu.iota {dimensions = array<i32: 0>} : vector<8x1xi32>
    %c0_i32 = arith.constant 0 : i32
    %55 = vector.broadcast %c0_i32 : i32 to vector<8x1xi32>
    %56 = arith.cmpi eq, %54, %55 : vector<8x1xi32>
    %c1_i32 = arith.constant 1 : i32
    %57 = tpu.dynamic_rotate %49 by %c1_i32 dim 0 : vector<8x32xf32>, i32 -> vector<8x32xf32>
    %c0_22 = arith.constant 0 : index
    %c0_23 = arith.constant 0 : index
    %c0_24 = arith.constant 0 : index
    %58 = vector.load %arg2[%c0_22, %c0_23, %c0_24] : memref<1x1x32xf32, #tpu.memory_space<vmem>>, vector<1x1x32xf32>
    %59 = vector.shape_cast %58 : vector<1x1x32xf32> to vector<1x32xf32>
    %60 = vector.shape_cast %56 : vector<8x1xi1> to vector<8x1xi1>
    %61 = vector.broadcast %60 : vector<8x1xi1> to vector<8x32xi1>
    %62 = vector.shape_cast %59 : vector<1x32xf32> to vector<1x32xf32>
    %63 = vector.broadcast %62 : vector<1x32xf32> to vector<8x32xf32>
    %64 = arith.select %61, %63, %57 : vector<8x32xi1>, vector<8x32xf32>
    %65 = arith.subf %49, %64 : vector<8x32xf32>
    %c0_25 = arith.constant 0 : index
    %c0_26 = arith.constant 0 : index
    %c0_27 = arith.constant 0 : index
    %66 = vector.load %arg4[%c0_25, %c0_26, %c0_27] : memref<4x1x32xf32, #tpu.memory_space<vmem>>, vector<1x1x32xf32>
    %67 = vector.shape_cast %66 : vector<1x1x32xf32> to vector<1x32xf32>
    %68 = vector.broadcast %67 : vector<1x32xf32> to vector<8x32xf32>
    %69 = arith.mulf %68, %65 : vector<8x32xf32>
    %70 = arith.addf %64, %69 : vector<8x32xf32>
    %c1 = arith.constant 1 : index
    %c0_28 = arith.constant 0 : index
    %c0_29 = arith.constant 0 : index
    %71 = vector.load %arg4[%c1, %c0_28, %c0_29] : memref<4x1x32xf32, #tpu.memory_space<vmem>>, vector<1x1x32xf32>
    %72 = vector.shape_cast %71 : vector<1x1x32xf32> to vector<1x32xf32>
    %73 = vector.broadcast %72 : vector<1x32xf32> to vector<8x32xf32>
    %74 = arith.mulf %73, %65 : vector<8x32xf32>
    %75 = arith.addf %64, %74 : vector<8x32xf32>
    %c2 = arith.constant 2 : index
    %c0_30 = arith.constant 0 : index
    %c0_31 = arith.constant 0 : index
    %76 = vector.load %arg4[%c2, %c0_30, %c0_31] : memref<4x1x32xf32, #tpu.memory_space<vmem>>, vector<1x1x32xf32>
    %77 = vector.shape_cast %76 : vector<1x1x32xf32> to vector<1x32xf32>
    %78 = vector.broadcast %77 : vector<1x32xf32> to vector<8x32xf32>
    %79 = arith.mulf %78, %65 : vector<8x32xf32>
    %80 = arith.addf %64, %79 : vector<8x32xf32>
    %c3 = arith.constant 3 : index
    %c0_32 = arith.constant 0 : index
    %c0_33 = arith.constant 0 : index
    %81 = vector.load %arg4[%c3, %c0_32, %c0_33] : memref<4x1x32xf32, #tpu.memory_space<vmem>>, vector<1x1x32xf32>
    %82 = vector.shape_cast %81 : vector<1x1x32xf32> to vector<1x32xf32>
    %83 = vector.broadcast %82 : vector<1x32xf32> to vector<8x32xf32>
    %84 = arith.mulf %83, %65 : vector<8x32xf32>
    %85 = arith.addf %64, %84 : vector<8x32xf32>
    %86 = arith.truncf %80 : vector<8x32xf32> to vector<8x32xbf16>
    %c0_34 = arith.constant 0 : index
    %c0_35 = arith.constant 0 : index
    %87 = vector.load %arg9[%c0_34, %c0_35] : memref<32x32xbf16, #tpu.memory_space<vmem>>, vector<32x32xbf16>
    %cst_36 = arith.constant dense<0.000000e+00> : vector<8x32xf32>
    %88 = tpu.matmul %86, %87, %cst_36 {dimension_numbers = #tpu.dot_dimension_numbers<[1], [0], [0], [1], [0, 0, 1, 1], [], []>} : vector<8x32xbf16>, vector<32x32xbf16>, vector<8x32xf32> -> vector<8x32xf32>
    %89 = arith.truncf %70 : vector<8x32xf32> to vector<8x32xbf16>
    %c0_37 = arith.constant 0 : index
    %c0_38 = arith.constant 0 : index
    %90 = vector.load %arg10[%c0_37, %c0_38] : memref<32x32xbf16, #tpu.memory_space<vmem>>, vector<32x32xbf16>
    %cst_39 = arith.constant dense<0.000000e+00> : vector<8x32xf32>
    %91 = tpu.matmul %89, %90, %cst_39 {dimension_numbers = #tpu.dot_dimension_numbers<[1], [0], [0], [1], [0, 0, 1, 1], [], []>} : vector<8x32xbf16>, vector<32x32xbf16>, vector<8x32xf32> -> vector<8x32xf32>
    %92 = arith.truncf %75 : vector<8x32xf32> to vector<8x32xbf16>
    %c0_40 = arith.constant 0 : index
    %c0_41 = arith.constant 0 : index
    %93 = vector.load %arg11[%c0_40, %c0_41] : memref<32x32xbf16, #tpu.memory_space<vmem>>, vector<32x32xbf16>
    %cst_42 = arith.constant dense<0.000000e+00> : vector<8x32xf32>
    %94 = tpu.matmul %92, %93, %cst_42 {dimension_numbers = #tpu.dot_dimension_numbers<[1], [0], [0], [1], [0, 0, 1, 1], [], []>} : vector<8x32xbf16>, vector<32x32xbf16>, vector<8x32xf32> -> vector<8x32xf32>
    %95 = arith.truncf %85 : vector<8x32xf32> to vector<8x32xbf16>
    %c0_43 = arith.constant 0 : index
    %c0_44 = arith.constant 0 : index
    %96 = vector.load %arg12[%c0_43, %c0_44] : memref<32x32xbf16, #tpu.memory_space<vmem>>, vector<32x32xbf16>
    %cst_45 = arith.constant dense<0.000000e+00> : vector<8x32xf32>
    %97 = tpu.matmul %95, %96, %cst_45 {dimension_numbers = #tpu.dot_dimension_numbers<[1], [0], [0], [1], [0, 0, 1, 1], [], []>} : vector<8x32xbf16>, vector<32x32xbf16>, vector<8x32xf32> -> vector<8x32xf32>
    %98 = arith.negf %97 : vector<8x32xf32>
    %99 = math.exp %98 : vector<8x32xf32>
    %cst_46 = arith.constant 1.000000e+00 : f32
    %100 = vector.broadcast %cst_46 : f32 to vector<8x32xf32>
    %101 = arith.addf %100, %99 : vector<8x32xf32>
    %102 = arith.divf %100, %101 : vector<8x32xf32>
    %103 = arith.mulf %97, %102 : vector<8x32xf32>
    %104 = vector.extract_strided_slice %88 {offsets = [0, 0], sizes = [8, 16], strides = [1, 1]} : vector<8x32xf32> to vector<8x16xf32>
    %105 = arith.truncf %104 : vector<8x16xf32> to vector<8x16xbf16>
    %106 = vector.extract_strided_slice %91 {offsets = [0, 0], sizes = [8, 16], strides = [1, 1]} : vector<8x32xf32> to vector<8x16xf32>
    %107 = vector.extract_strided_slice %94 {offsets = [0, 0], sizes = [8, 16], strides = [1, 1]} : vector<8x32xf32> to vector<8x16xf32>
    %108 = arith.truncf %107 : vector<8x16xf32> to vector<8x16xbf16>
    %109 = vector.extract_strided_slice %103 {offsets = [0, 0], sizes = [8, 16], strides = [1, 1]} : vector<8x32xf32> to vector<8x16xf32>
    %c0_47 = arith.constant 0 : index
    %c0_48 = arith.constant 0 : index
    %c0_49 = arith.constant 0 : index
    %110 = vector.load %arg16[%c0_47, %c0_48, %c0_49] : memref<2x8x8xf32, #tpu.memory_space<vmem>>, vector<1x8x8xf32>
    %111 = vector.shape_cast %110 : vector<1x8x8xf32> to vector<8x8xf32>
    %c0_50 = arith.constant 0 : index
    %c0_51 = arith.constant 0 : index
    %112 = vector.load %arg17[%c0_50, %c0_51] : memref<8x2xf32, #tpu.memory_space<vmem>>, vector<8x1xf32>
    %c0_52 = arith.constant 0 : index
    %c0_53 = arith.constant 0 : index
    %113 = vector.load %arg18[%c0_52, %c0_53] : memref<8x2xf32, #tpu.memory_space<vmem>>, vector<8x1xf32>
    %c0_54 = arith.constant 0 : index
    %c0_55 = arith.constant 0 : index
    %114 = vector.load %arg19[%c0_54, %c0_55] : memref<1x2xf32, #tpu.memory_space<vmem>>, vector<1x1xf32>
    %c0_56 = arith.constant 0 : index
    %c0_57 = arith.constant 0 : index
    %c0_58 = arith.constant 0 : index
    %c0_59 = arith.constant 0 : index
    %115 = vector.load %arg3[%c0_56, %c0_57, %c0_58, %c0_59] : memref<1x2x16x16xf32, #tpu.memory_space<vmem>>, vector<1x1x16x16xf32>
    %116 = vector.shape_cast %115 : vector<1x1x16x16xf32> to vector<16x16xf32>
    %117 = arith.truncf %106 : vector<8x16xf32> to vector<8x16xbf16>
    %cst_60 = arith.constant dense<0.000000e+00> : vector<8x8xf32>
    %118 = tpu.matmul %105, %117, %cst_60 {dimension_numbers = #tpu.dot_dimension_numbers<[1], [1], [0], [0], [0, 0, 1, 0], [], []>} : vector<8x16xbf16>, vector<8x16xbf16>, vector<8x8xf32> -> vector<8x8xf32>
    %119 = arith.mulf %118, %111 : vector<8x8xf32>
    %120 = arith.truncf %119 : vector<8x8xf32> to vector<8x8xbf16>
    %cst_61 = arith.constant dense<0.000000e+00> : vector<8x16xf32>
    %121 = tpu.matmul %120, %108, %cst_61 {dimension_numbers = #tpu.dot_dimension_numbers<[1], [0], [0], [1], [0, 0, 1, 1], [], []>} : vector<8x8xbf16>, vector<8x16xbf16>, vector<8x16xf32> -> vector<8x16xf32>
    %122 = arith.truncf %116 : vector<16x16xf32> to vector<16x16xbf16>
    %cst_62 = arith.constant dense<0.000000e+00> : vector<8x16xf32>
    %123 = tpu.matmul %105, %122, %cst_62 {dimension_numbers = #tpu.dot_dimension_numbers<[1], [0], [0], [1], [0, 0, 1, 1], [], []>} : vector<8x16xbf16>, vector<16x16xbf16>, vector<8x16xf32> -> vector<8x16xf32>
    %124 = vector.broadcast %113 : vector<8x1xf32> to vector<8x16xf32>
    %125 = arith.mulf %123, %124 : vector<8x16xf32>
    %126 = arith.addf %121, %125 : vector<8x16xf32>
    %127 = vector.broadcast %114 : vector<1x1xf32> to vector<16x16xf32>
    %128 = arith.mulf %127, %116 : vector<16x16xf32>
    %129 = vector.broadcast %112 : vector<8x1xf32> to vector<8x16xf32>
    %130 = arith.mulf %106, %129 : vector<8x16xf32>
    %131 = arith.truncf %130 : vector<8x16xf32> to vector<8x16xbf16>
    %cst_63 = arith.constant dense<0.000000e+00> : vector<16x16xf32>
    %132 = tpu.matmul %131, %108, %cst_63 {dimension_numbers = #tpu.dot_dimension_numbers<[0], [0], [1], [1], [0, 1, 1, 1], [], []>} : vector<8x16xbf16>, vector<8x16xbf16>, vector<16x16xf32> -> vector<16x16xf32>
    %133 = arith.addf %128, %132 : vector<16x16xf32>
    %c0_64 = arith.constant 0 : index
    %c0_65 = arith.constant 0 : index
    %c0_66 = arith.constant 0 : index
    %c0_67 = arith.constant 0 : index
    %134 = vector.load %arg21[%c0_64, %c0_65, %c0_66, %c0_67] : memref<1x2x16x16xf32, #tpu.memory_space<vmem>>, vector<1x1x16x16xf32>
    %135 = vector.shape_cast %134 : vector<1x1x16x16xf32> to vector<16x16xf32>
    %136 = vector.shape_cast %133 : vector<16x16xf32> to vector<1x1x16x16xf32>
    tpu.vector_store %arg21[%c0_64, %c0_65, %c0_66, %c0_67], %136 {strides = array<i32>} : memref<1x2x16x16xf32, #tpu.memory_space<vmem>>, vector<1x1x16x16xf32>,
    %cst_68 = arith.constant 1.250000e-01 : f32
    %137 = vector.broadcast %cst_68 : f32 to vector<8x16xf32>
    %138 = arith.mulf %126, %137 : vector<8x16xf32>
    %cst_69 = arith.constant dense<0.000000e+00> : vector<8xf32>
    %139 = vector.multi_reduction <add>, %138, %cst_69 [1] : vector<8x16xf32> to vector<8xf32>
    %140 = vector.shape_cast %139 : vector<8xf32> to vector<8x1xf32>
    %cst_70 = arith.constant 1.600000e+01 : f32
    %141 = vector.broadcast %cst_70 : f32 to vector<8x1xf32>
    %142 = arith.divf %140, %141 : vector<8x1xf32>
    %143 = vector.broadcast %142 : vector<8x1xf32> to vector<8x16xf32>
    %144 = arith.subf %138, %143 : vector<8x16xf32>
    %145 = arith.mulf %144, %144 : vector<8x16xf32>
    %cst_71 = arith.constant dense<0.000000e+00> : vector<8xf32>
    %146 = vector.multi_reduction <add>, %145, %cst_71 [1] : vector<8x16xf32> to vector<8xf32>
    %147 = vector.shape_cast %146 : vector<8xf32> to vector<8x1xf32>
    %cst_72 = arith.constant 1.600000e+01 : f32
    %148 = vector.broadcast %cst_72 : f32 to vector<8x1xf32>
    %149 = arith.divf %147, %148 : vector<8x1xf32>
    %150 = vector.broadcast %142 : vector<8x1xf32> to vector<8x16xf32>
    %151 = arith.subf %138, %150 : vector<8x16xf32>
    %cst_73 = arith.constant 9.99999974E-6 : f32
    %152 = vector.broadcast %cst_73 : f32 to vector<8x1xf32>
    %153 = arith.addf %149, %152 : vector<8x1xf32>
    %154 = math.rsqrt %153 : vector<8x1xf32>
    %155 = vector.broadcast %154 : vector<8x1xf32> to vector<8x16xf32>
    %156 = arith.mulf %151, %155 : vector<8x16xf32>
    %c0_74 = arith.constant 0 : index
    %c0_75 = arith.constant 0 : index
    %c0_76 = arith.constant 0 : index
    %157 = vector.load %arg14[%c0_74, %c0_75, %c0_76] : memref<2x1x16xf32, #tpu.memory_space<vmem>>, vector<1x1x16xf32>
    %158 = vector.shape_cast %157 : vector<1x1x16xf32> to vector<1x16xf32>
    %159 = vector.broadcast %158 : vector<1x16xf32> to vector<8x16xf32>
    %160 = arith.mulf %156, %159 : vector<8x16xf32>
    %c0_77 = arith.constant 0 : index
    %c0_78 = arith.constant 0 : index
    %c0_79 = arith.constant 0 : index
    %161 = vector.load %arg15[%c0_77, %c0_78, %c0_79] : memref<2x1x16xf32, #tpu.memory_space<vmem>>, vector<1x1x16xf32>
    %162 = vector.shape_cast %161 : vector<1x1x16xf32> to vector<1x16xf32>
    %163 = vector.broadcast %162 : vector<1x16xf32> to vector<8x16xf32>
    %164 = arith.addf %160, %163 : vector<8x16xf32>
    %165 = arith.mulf %164, %109 : vector<8x16xf32>
    %c0_80 = arith.constant 0 : index
    %c0_81 = arith.constant 0 : index
    %166 = vector.load %arg23[%c0_80, %c0_81] : memref<8x32xf32, #tpu.memory_space<vmem>>, vector<8x16xf32>
    tpu.vector_store %arg23[%c0_80, %c0_81], %165 {strides = array<i32>} : memref<8x32xf32, #tpu.memory_space<vmem>>, vector<8x16xf32>,
    %167 = vector.extract_strided_slice %88 {offsets = [0, 16], sizes = [8, 16], strides = [1, 1]} : vector<8x32xf32> to vector<8x16xf32>
    %168 = arith.truncf %167 : vector<8x16xf32> to vector<8x16xbf16>
    %169 = vector.extract_strided_slice %91 {offsets = [0, 16], sizes = [8, 16], strides = [1, 1]} : vector<8x32xf32> to vector<8x16xf32>
    %170 = vector.extract_strided_slice %94 {offsets = [0, 16], sizes = [8, 16], strides = [1, 1]} : vector<8x32xf32> to vector<8x16xf32>
    %171 = arith.truncf %170 : vector<8x16xf32> to vector<8x16xbf16>
    %172 = vector.extract_strided_slice %103 {offsets = [0, 16], sizes = [8, 16], strides = [1, 1]} : vector<8x32xf32> to vector<8x16xf32>
    %c1_82 = arith.constant 1 : index
    %c0_83 = arith.constant 0 : index
    %c0_84 = arith.constant 0 : index
    %173 = vector.load %arg16[%c1_82, %c0_83, %c0_84] : memref<2x8x8xf32, #tpu.memory_space<vmem>>, vector<1x8x8xf32>
    %174 = vector.shape_cast %173 : vector<1x8x8xf32> to vector<8x8xf32>
    %c0_85 = arith.constant 0 : index
    %c1_86 = arith.constant 1 : index
    %175 = vector.load %arg17[%c0_85, %c1_86] : memref<8x2xf32, #tpu.memory_space<vmem>>, vector<8x1xf32>
    %c0_87 = arith.constant 0 : index
    %c1_88 = arith.constant 1 : index
    %176 = vector.load %arg18[%c0_87, %c1_88] : memref<8x2xf32, #tpu.memory_space<vmem>>, vector<8x1xf32>
    %c0_89 = arith.constant 0 : index
    %c1_90 = arith.constant 1 : index
    %177 = vector.load %arg19[%c0_89, %c1_90] : memref<1x2xf32, #tpu.memory_space<vmem>>, vector<1x1xf32>
    %c0_91 = arith.constant 0 : index
    %c1_92 = arith.constant 1 : index
    %c0_93 = arith.constant 0 : index
    %c0_94 = arith.constant 0 : index
    %178 = vector.load %arg3[%c0_91, %c1_92, %c0_93, %c0_94] : memref<1x2x16x16xf32, #tpu.memory_space<vmem>>, vector<1x1x16x16xf32>
    %179 = vector.shape_cast %178 : vector<1x1x16x16xf32> to vector<16x16xf32>
    %180 = arith.truncf %169 : vector<8x16xf32> to vector<8x16xbf16>
    %cst_95 = arith.constant dense<0.000000e+00> : vector<8x8xf32>
    %181 = tpu.matmul %168, %180, %cst_95 {dimension_numbers = #tpu.dot_dimension_numbers<[1], [1], [0], [0], [0, 0, 1, 0], [], []>} : vector<8x16xbf16>, vector<8x16xbf16>, vector<8x8xf32> -> vector<8x8xf32>
    %182 = arith.mulf %181, %174 : vector<8x8xf32>
    %183 = arith.truncf %182 : vector<8x8xf32> to vector<8x8xbf16>
    %cst_96 = arith.constant dense<0.000000e+00> : vector<8x16xf32>
    %184 = tpu.matmul %183, %171, %cst_96 {dimension_numbers = #tpu.dot_dimension_numbers<[1], [0], [0], [1], [0, 0, 1, 1], [], []>} : vector<8x8xbf16>, vector<8x16xbf16>, vector<8x16xf32> -> vector<8x16xf32>
    %185 = arith.truncf %179 : vector<16x16xf32> to vector<16x16xbf16>
    %cst_97 = arith.constant dense<0.000000e+00> : vector<8x16xf32>
    %186 = tpu.matmul %168, %185, %cst_97 {dimension_numbers = #tpu.dot_dimension_numbers<[1], [0], [0], [1], [0, 0, 1, 1], [], []>} : vector<8x16xbf16>, vector<16x16xbf16>, vector<8x16xf32> -> vector<8x16xf32>
    %187 = vector.broadcast %176 : vector<8x1xf32> to vector<8x16xf32>
    %188 = arith.mulf %186, %187 : vector<8x16xf32>
    %189 = arith.addf %184, %188 : vector<8x16xf32>
    %190 = vector.broadcast %177 : vector<1x1xf32> to vector<16x16xf32>
    %191 = arith.mulf %190, %179 : vector<16x16xf32>
    %192 = vector.broadcast %175 : vector<8x1xf32> to vector<8x16xf32>
    %193 = arith.mulf %169, %192 : vector<8x16xf32>
    %194 = arith.truncf %193 : vector<8x16xf32> to vector<8x16xbf16>
    %cst_98 = arith.constant dense<0.000000e+00> : vector<16x16xf32>
    %195 = tpu.matmul %194, %171, %cst_98 {dimension_numbers = #tpu.dot_dimension_numbers<[0], [0], [1], [1], [0, 1, 1, 1], [], []>} : vector<8x16xbf16>, vector<8x16xbf16>, vector<16x16xf32> -> vector<16x16xf32>
    %196 = arith.addf %191, %195 : vector<16x16xf32>
    %c0_99 = arith.constant 0 : index
    %c1_100 = arith.constant 1 : index
    %c0_101 = arith.constant 0 : index
    %c0_102 = arith.constant 0 : index
    %197 = vector.load %arg21[%c0_99, %c1_100, %c0_101, %c0_102] : memref<1x2x16x16xf32, #tpu.memory_space<vmem>>, vector<1x1x16x16xf32>
    %198 = vector.shape_cast %197 : vector<1x1x16x16xf32> to vector<16x16xf32>
    %199 = vector.shape_cast %196 : vector<16x16xf32> to vector<1x1x16x16xf32>
    tpu.vector_store %arg21[%c0_99, %c1_100, %c0_101, %c0_102], %199 {strides = array<i32>} : memref<1x2x16x16xf32, #tpu.memory_space<vmem>>, vector<1x1x16x16xf32>,
    %cst_103 = arith.constant 1.250000e-01 : f32
    %200 = vector.broadcast %cst_103 : f32 to vector<8x16xf32>
    %201 = arith.mulf %189, %200 : vector<8x16xf32>
    %cst_104 = arith.constant dense<0.000000e+00> : vector<8xf32>
    %202 = vector.multi_reduction <add>, %201, %cst_104 [1] : vector<8x16xf32> to vector<8xf32>
    %203 = vector.shape_cast %202 : vector<8xf32> to vector<8x1xf32>
    %cst_105 = arith.constant 1.600000e+01 : f32
    %204 = vector.broadcast %cst_105 : f32 to vector<8x1xf32>
    %205 = arith.divf %203, %204 : vector<8x1xf32>
    %206 = vector.broadcast %205 : vector<8x1xf32> to vector<8x16xf32>
    %207 = arith.subf %201, %206 : vector<8x16xf32>
    %208 = arith.mulf %207, %207 : vector<8x16xf32>
    %cst_106 = arith.constant dense<0.000000e+00> : vector<8xf32>
    %209 = vector.multi_reduction <add>, %208, %cst_106 [1] : vector<8x16xf32> to vector<8xf32>
    %210 = vector.shape_cast %209 : vector<8xf32> to vector<8x1xf32>
    %cst_107 = arith.constant 1.600000e+01 : f32
    %211 = vector.broadcast %cst_107 : f32 to vector<8x1xf32>
    %212 = arith.divf %210, %211 : vector<8x1xf32>
    %213 = vector.broadcast %205 : vector<8x1xf32> to vector<8x16xf32>
    %214 = arith.subf %201, %213 : vector<8x16xf32>
    %cst_108 = arith.constant 9.99999974E-6 : f32
    %215 = vector.broadcast %cst_108 : f32 to vector<8x1xf32>
    %216 = arith.addf %212, %215 : vector<8x1xf32>
    %217 = math.rsqrt %216 : vector<8x1xf32>
    %218 = vector.broadcast %217 : vector<8x1xf32> to vector<8x16xf32>
    %219 = arith.mulf %214, %218 : vector<8x16xf32>
    %c1_109 = arith.constant 1 : index
    %c0_110 = arith.constant 0 : index
    %c0_111 = arith.constant 0 : index
    %220 = vector.load %arg14[%c1_109, %c0_110, %c0_111] : memref<2x1x16xf32, #tpu.memory_space<vmem>>, vector<1x1x16xf32>
    %221 = vector.shape_cast %220 : vector<1x1x16xf32> to vector<1x16xf32>
    %222 = vector.broadcast %221 : vector<1x16xf32> to vector<8x16xf32>
    %223 = arith.mulf %219, %222 : vector<8x16xf32>
    %c1_112 = arith.constant 1 : index
    %c0_113 = arith.constant 0 : index
    %c0_114 = arith.constant 0 : index
    %224 = vector.load %arg15[%c1_112, %c0_113, %c0_114] : memref<2x1x16xf32, #tpu.memory_space<vmem>>, vector<1x1x16xf32>
    %225 = vector.shape_cast %224 : vector<1x1x16xf32> to vector<1x16xf32>
    %226 = vector.broadcast %225 : vector<1x16xf32> to vector<8x16xf32>
    %227 = arith.addf %223, %226 : vector<8x16xf32>
    %228 = arith.mulf %227, %172 : vector<8x16xf32>
    %c0_115 = arith.constant 0 : index
    %c16 = arith.constant 16 : index
    %229 = vector.load %arg23[%c0_115, %c16] : memref<8x32xf32, #tpu.memory_space<vmem>>, vector<8x16xf32>
    tpu.vector_store %arg23[%c0_115, %c16], %228 {strides = array<i32>} : memref<8x32xf32, #tpu.memory_space<vmem>>, vector<8x16xf32>,
    %c0_116 = arith.constant 0 : index
    %c0_117 = arith.constant 0 : index
    %230 = vector.load %arg23[%c0_116, %c0_117] : memref<8x32xf32, #tpu.memory_space<vmem>>, vector<8x32xf32>
    %231 = arith.truncf %230 : vector<8x32xf32> to vector<8x32xbf16>
    %c0_118 = arith.constant 0 : index
    %c0_119 = arith.constant 0 : index
    %232 = vector.load %arg13[%c0_118, %c0_119] : memref<32x32xbf16, #tpu.memory_space<vmem>>, vector<32x32xbf16>
    %cst_120 = arith.constant dense<0.000000e+00> : vector<8x32xf32>
    %233 = tpu.matmul %231, %232, %cst_120 {dimension_numbers = #tpu.dot_dimension_numbers<[1], [0], [0], [1], [0, 0, 1, 1], [], []>} : vector<8x32xbf16>, vector<32x32xbf16>, vector<8x32xf32> -> vector<8x32xf32>
    %234 = arith.addf %25, %233 : vector<8x32xf32>
    %c0_121 = arith.constant 0 : index
    %c0_122 = arith.constant 0 : index
    %c0_123 = arith.constant 0 : index
    %235 = vector.load %arg20[%c0_121, %c0_122, %c0_123] : memref<1x8x32xf32, #tpu.memory_space<vmem>>, vector<1x8x32xf32>
    %236 = vector.shape_cast %235 : vector<1x8x32xf32> to vector<8x32xf32>
    %237 = vector.shape_cast %234 : vector<8x32xf32> to vector<1x8x32xf32>
    tpu.vector_store %arg20[%c0_121, %c0_122, %c0_123], %237 {strides = array<i32>} : memref<1x8x32xf32, #tpu.memory_space<vmem>>, vector<1x8x32xf32>,
    return
  }
  func.func @transform_0(%arg0: i32) -> (i32, i32, i32) {
    %c0_i32 = arith.constant 0 : i32
    %c0_i32_0 = arith.constant 0 : i32
    %c0_i32_1 = arith.constant 0 : i32
    return %arg0, %c0_i32, %c0_i32_0 : i32, i32, i32
  }
  func.func @transform_1(%arg0: i32) -> (i32, i32, i32) {
    %c0_i32 = arith.constant 0 : i32
    %c0_i32_0 = arith.constant 0 : i32
    %c0_i32_1 = arith.constant 0 : i32
    return %arg0, %c0_i32, %c0_i32_0 : i32, i32, i32
  }
  func.func @transform_2(%arg0: i32) -> (i32, i32, i32, i32) {
    %c0_i32 = arith.constant 0 : i32
    %c0_i32_0 = arith.constant 0 : i32
    %c0_i32_1 = arith.constant 0 : i32
    %c0_i32_2 = arith.constant 0 : i32
    return %arg0, %c0_i32, %c0_i32_0, %c0_i32_1 : i32, i32, i32, i32
  }
  func.func @transform_3(%arg0: i32) -> (i32, i32, i32) {
    %c0_i32 = arith.constant 0 : i32
    %c0_i32_0 = arith.constant 0 : i32
    %c0_i32_1 = arith.constant 0 : i32
    %c0_i32_2 = arith.constant 0 : i32
    return %c0_i32, %c0_i32_0, %c0_i32_1 : i32, i32, i32
  }
  func.func @transform_4(%arg0: i32) -> (i32, i32) {
    %c0_i32 = arith.constant 0 : i32
    %c0_i32_0 = arith.constant 0 : i32
    %c0_i32_1 = arith.constant 0 : i32
    return %c0_i32, %c0_i32_0 : i32, i32
  }
  func.func @transform_5(%arg0: i32) -> (i32, i32) {
    %c0_i32 = arith.constant 0 : i32
    %c0_i32_0 = arith.constant 0 : i32
    %c0_i32_1 = arith.constant 0 : i32
    return %c0_i32, %c0_i32_0 : i32, i32
  }
  func.func @transform_6(%arg0: i32) -> (i32, i32) {
    %c0_i32 = arith.constant 0 : i32
    %c0_i32_0 = arith.constant 0 : i32
    %c0_i32_1 = arith.constant 0 : i32
    return %c0_i32, %c0_i32_0 : i32, i32
  }
  func.func @transform_7(%arg0: i32) -> (i32, i32) {
    %c0_i32 = arith.constant 0 : i32
    %c0_i32_0 = arith.constant 0 : i32
    %c0_i32_1 = arith.constant 0 : i32
    return %c0_i32, %c0_i32_0 : i32, i32
  }
  func.func @transform_8(%arg0: i32) -> (i32, i32) {
    %c0_i32 = arith.constant 0 : i32
    %c0_i32_0 = arith.constant 0 : i32
    %c0_i32_1 = arith.constant 0 : i32
    return %c0_i32, %c0_i32_0 : i32, i32
  }
  func.func @transform_9(%arg0: i32) -> (i32, i32) {
    %c0_i32 = arith.constant 0 : i32
    %c0_i32_0 = arith.constant 0 : i32
    %c0_i32_1 = arith.constant 0 : i32
    return %c0_i32, %c0_i32_0 : i32, i32
  }
  func.func @transform_10(%arg0: i32) -> (i32, i32) {
    %c0_i32 = arith.constant 0 : i32
    %c0_i32_0 = arith.constant 0 : i32
    %c0_i32_1 = arith.constant 0 : i32
    return %c0_i32, %c0_i32_0 : i32, i32
  }
  func.func @transform_11(%arg0: i32) -> (i32, i32) {
    %c0_i32 = arith.constant 0 : i32
    %c0_i32_0 = arith.constant 0 : i32
    %c0_i32_1 = arith.constant 0 : i32
    return %c0_i32, %c0_i32_0 : i32, i32
  }
  func.func @transform_12(%arg0: i32) -> (i32, i32) {
    %c0_i32 = arith.constant 0 : i32
    %c0_i32_0 = arith.constant 0 : i32
    %c0_i32_1 = arith.constant 0 : i32
    return %c0_i32, %c0_i32_0 : i32, i32
  }
  func.func @transform_13(%arg0: i32) -> (i32, i32, i32) {
    %c0_i32 = arith.constant 0 : i32
    %c0_i32_0 = arith.constant 0 : i32
    %c0_i32_1 = arith.constant 0 : i32
    %c0_i32_2 = arith.constant 0 : i32
    return %c0_i32, %c0_i32_0, %c0_i32_1 : i32, i32, i32
  }
  func.func @transform_14(%arg0: i32) -> (i32, i32, i32) {
    %c0_i32 = arith.constant 0 : i32
    %c0_i32_0 = arith.constant 0 : i32
    %c0_i32_1 = arith.constant 0 : i32
    %c0_i32_2 = arith.constant 0 : i32
    return %c0_i32, %c0_i32_0, %c0_i32_1 : i32, i32, i32
  }
  func.func @transform_15(%arg0: i32) -> (i32, i32, i32) {
    %c0_i32 = arith.constant 0 : i32
    %c0_i32_0 = arith.constant 0 : i32
    %c0_i32_1 = arith.constant 0 : i32
    %c0_i32_2 = arith.constant 0 : i32
    return %c0_i32, %c0_i32_0, %c0_i32_1 : i32, i32, i32
  }
  func.func @transform_16(%arg0: i32) -> (i32, i32) {
    %c0_i32 = arith.constant 0 : i32
    %c0_i32_0 = arith.constant 0 : i32
    %c0_i32_1 = arith.constant 0 : i32
    return %c0_i32, %c0_i32_0 : i32, i32
  }
  func.func @transform_17(%arg0: i32) -> (i32, i32) {
    %c0_i32 = arith.constant 0 : i32
    %c0_i32_0 = arith.constant 0 : i32
    %c0_i32_1 = arith.constant 0 : i32
    return %c0_i32, %c0_i32_0 : i32, i32
  }
  func.func @transform_18(%arg0: i32) -> (i32, i32) {
    %c0_i32 = arith.constant 0 : i32
    %c0_i32_0 = arith.constant 0 : i32
    %c0_i32_1 = arith.constant 0 : i32
    return %c0_i32, %c0_i32_0 : i32, i32
  }
  func.func @transform_19(%arg0: i32) -> (i32, i32, i32) {
    %c0_i32 = arith.constant 0 : i32
    %c0_i32_0 = arith.constant 0 : i32
    %c0_i32_1 = arith.constant 0 : i32
    return %arg0, %c0_i32, %c0_i32_0 : i32, i32, i32
  }
  func.func @transform_20(%arg0: i32) -> (i32, i32, i32, i32) {
    %c0_i32 = arith.constant 0 : i32
    %c0_i32_0 = arith.constant 0 : i32
    %c0_i32_1 = arith.constant 0 : i32
    %c0_i32_2 = arith.constant 0 : i32
    return %arg0, %c0_i32, %c0_i32_0, %c0_i32_1 : i32, i32, i32, i32
  }
  func.func @transform_21(%arg0: i32) -> (i32, i32, i32) {
    %c0_i32 = arith.constant 0 : i32
    %c0_i32_0 = arith.constant 0 : i32
    %c0_i32_1 = arith.constant 0 : i32
    return %arg0, %c0_i32, %c0_i32_0 : i32, i32, i32
  }
}

</mosaic_0001>

<llo_original>
// kernel: tpu_custom_call.1
$region0: #{tpu_custom_call.1}
  #allocation0 [shape = 'u32[]', space=smem, size = 0x4, offset = 0x4, fixed_abs, tag = 'smem constant byte address 0x4 - core index']
  #allocation1 [shape = 'u32[144,128]{1,0:T(1,128)}', space=vmem, size = 0x12000, scoped, tag = 'internal scratch']
  #allocation2 [shape = 'f32[8,32]{1,0:T(8,128)}', space=vmem, size = 0x1000, scoped, tag = 'scratch operand']
  %s0 = inlined_call_operand.vmem [shape: f32[2,8,32], index: 0, kind: input, shape index: {}]
  %s1 = inlined_call_operand.vmem [shape: f32[2,1,32], index: 1, kind: input, shape index: {}]
  %s2 = inlined_call_operand.hbm [shape: f32[2,2,16,16], index: 2, kind: input, shape index: {}, may-alias: {2,20}]
  %s3 = inlined_call_operand.vmem [shape: f32[4,1,32], index: 3, kind: input, shape index: {}]
  %s4 = inlined_call_operand.vmem [shape: f32[1,32], index: 4, kind: input, shape index: {}]
  %s5 = inlined_call_operand.vmem [shape: f32[1,32], index: 5, kind: input, shape index: {}]
  %s6 = inlined_call_operand.vmem [shape: f32[1,32], index: 6, kind: input, shape index: {}]
  %s7 = inlined_call_operand.vmem [shape: f32[1,32], index: 7, kind: input, shape index: {}]
  %s8 = inlined_call_operand.vmem [shape: bf16[32,32], index: 8, kind: input, shape index: {}]
  %s9 = inlined_call_operand.vmem [shape: bf16[32,32], index: 9, kind: input, shape index: {}]
  %s10 = inlined_call_operand.vmem [shape: bf16[32,32], index: 10, kind: input, shape index: {}]
  %s11 = inlined_call_operand.vmem [shape: bf16[32,32], index: 11, kind: input, shape index: {}]
  %s12 = inlined_call_operand.vmem [shape: bf16[32,32], index: 12, kind: input, shape index: {}]
  %s13 = inlined_call_operand.vmem [shape: f32[2,1,16], index: 13, kind: input, shape index: {}]
  %s14 = inlined_call_operand.vmem [shape: f32[2,1,16], index: 14, kind: input, shape index: {}]
  %s15 = inlined_call_operand.vmem [shape: f32[2,8,8], index: 15, kind: input, shape index: {}]
  %s16 = inlined_call_operand.vmem [shape: f32[8,2], index: 16, kind: input, shape index: {}]
  %s17 = inlined_call_operand.vmem [shape: f32[8,2], index: 17, kind: input, shape index: {}]
  %s18 = inlined_call_operand.vmem [shape: f32[1,2], index: 18, kind: input, shape index: {}]
  %s19 = inlined_call_operand.hbm [shape: f32[2,8,32], index: 19, kind: output, shape index: {0}]
  %s20 = inlined_call_operand.hbm [shape: f32[2,2,16,16], index: 20, kind: output, shape index: {1}, may-alias: {2,20}]
  %s21 = inlined_call_operand.hbm [shape: f32[2,1,32], index: 21, kind: output, shape index: {2}]
  %22 = xla_tuple %s19, %s20, %s21
  %s23 = sld [smem:[#allocation0]]
  $region129: #{tpu_custom_call.1} parent=0
    _
  %s25 = ssub.s32 1, %s23
  %s26 = scalar_select 0, %s25, %s23
  $region1: #{tpu_custom_call.1} parent=0
    #allocation3 [shape = 'u8[32768]{0}', space=vmem, size = 0x8000, scoped, tag = 'input window, operand 2']
    #allocation4 [shape = 's32[2]{0}', space=sflag, size = 0x8, scoped, tag = 'scoped memory for tpu_custom_call.1']
    #allocation5 [shape = 's32[2]{0}', space=sflag, size = 0x8, scoped, tag = 'scoped memory for tpu_custom_call.1']
    #allocation6 [shape = 'u8[8192]{0}', space=vmem, size = 0x2000, scoped, tag = 'output window, operand 0']
    #allocation7 [shape = 'u8[32768]{0}', space=vmem, size = 0x8000, scoped, tag = 'output window, operand 1']
    #allocation8 [shape = 's32[2]{0}', space=sflag, size = 0x8, scoped, tag = 'scoped memory for tpu_custom_call.1']
    #allocation9 [shape = 'u8[1024]{0}', space=vmem, size = 0x400, scoped, tag = 'output window, operand 2']
    %27 = vsyncpa [#allocation4], 0
    %s28 = scalar_lea.sflag [#allocation4], 1
    %29 = vsyncpa %s28, 0
    %30 = vsyncpa [#allocation5], 0
    %s31 = scalar_lea.sflag [#allocation5], 1
    %32 = vsyncpa %s31, 0
    %33 = vsyncpa [#allocation8], 0
    %s34 = scalar_lea.sflag [#allocation8], 1
    %35 = vsyncpa %s34, 0
    loop: start=0, step=1, limit=4
    $region2: #{tpu_custom_call.1} parent=1 // loop_pre_header
      _
    $region3: #{tpu_custom_call.1} parent=1 // loop_header
      %s37 = sphi 0, %s41
      %p38 = scmp.ge.s32.totalorder %s37, 4
      %s47 = sphi 0, %s49
      %s50 = sphi 0, %s47
      %s51 = sphi 0, %s50
      %s67 = sphi 0, %s51
      %s73 = sphi 0, %s75
      %s76 = sphi 0, %s73
      %s77 = sphi 0, %s76
      %s93 = sphi 0, %s77
      %s99 = sphi 0, %s101
      %s102 = sphi 0, %s99
      %s103 = sphi 0, %s102
      %s119 = sphi 0, %s103
      %s123 = sphi 0, %s123
      %s125 = sphi 0, %s123
      %s126 = sphi 0, %s125
      %s140 = sphi 0, %s126
      %s144 = sphi 0, %s144
      %s146 = sphi 0, %s144
      %s147 = sphi 0, %s146
      %s161 = sphi 0, %s147
      %s165 = sphi 0, %s165
      %s167 = sphi 0, %s165
      %s168 = sphi 0, %s167
      %s182 = sphi 0, %s168
      %s186 = sphi 0, %s186
      %s188 = sphi 0, %s186
      %s189 = sphi 0, %s188
      %s203 = sphi 0, %s189
      %s207 = sphi 0, %s207
      %s209 = sphi 0, %s207
      %s210 = sphi 0, %s209
      %s224 = sphi 0, %s210
      %s228 = sphi 0, %s228
      %s230 = sphi 0, %s228
      %s231 = sphi 0, %s230
      %s245 = sphi 0, %s231
      %s249 = sphi 0, %s249
      %s251 = sphi 0, %s249
      %s252 = sphi 0, %s251
      %s266 = sphi 0, %s252
      %s270 = sphi 0, %s270
      %s272 = sphi 0, %s270
      %s273 = sphi 0, %s272
      %s287 = sphi 0, %s273
      %s291 = sphi 0, %s291
      %s293 = sphi 0, %s291
      %s294 = sphi 0, %s293
      %s308 = sphi 0, %s294
      %s312 = sphi 0, %s312
      %s314 = sphi 0, %s312
      %s315 = sphi 0, %s314
      %s329 = sphi 0, %s315
      %s333 = sphi 0, %s333
      %s335 = sphi 0, %s333
      %s336 = sphi 0, %s335
      %s350 = sphi 0, %s336
      %s354 = sphi 0, %s354
      %s356 = sphi 0, %s354
      %s357 = sphi 0, %s356
      %s371 = sphi 0, %s357
      %s375 = sphi 0, %s375
      %s377 = sphi 0, %s375
      %s378 = sphi 0, %s377
      %s392 = sphi 0, %s378
      %s396 = sphi 0, %s396
      %s398 = sphi 0, %s396
      %s399 = sphi 0, %s398
      %s413 = sphi 0, %s399
      %s417 = sphi 0, %s417
      %s419 = sphi 0, %s417
      %s420 = sphi 0, %s419
      %s434 = sphi 0, %s420
      %s438 = sphi 0, %s438
      %s440 = sphi 0, %s438
      %s441 = sphi 0, %s440
      %s455 = sphi 0, %s441
      %s461 = sphi 0, %s463
      %s464 = sphi 0, %s461
      %s465 = sphi 0, %s464
      %s481 = sphi 0, %s465
      %s487 = sphi 0, %s489
      %s490 = sphi 0, %s487
      %s491 = sphi 0, %s490
      %s507 = sphi 0, %s491
      %s513 = sphi 0, %s515
      %s516 = sphi 0, %s513
      %s517 = sphi 0, %s516
      %s533 = sphi 0, %s517
    $region4: #{tpu_custom_call.1} parent=1 // loop_header_branch
      %40 = sbr.rel (%p38) target = $region8
    $region5: #{tpu_custom_call.1} parent=1 // loop_body
      %s42 = ssub.s32 %s37, 1
      %s43 = ssub.s32 %s37, 2
      %s44 = sadd.s32 %s37, 1
      %s45 = ssub.s32 %s37, %s44
      %p46 = scmp.eq.s32.totalorder %s45, 0
      %s48 = sadd.s32 %s47, 1
      %s49 = scalar_select %p46, %s47, %s48
      %p52 = pneg %p46
      %p53 = scmp.eq.s32.totalorder %s37, 1
      %p54 = por %p52, %p53
      %p55 = scmp.ne.s32.totalorder %s47, %s50
      %p56 = scmp.eq.s32.totalorder %s37, 0
      %p57 = por %p55, %p56
      %p58 = scmp.ne.s32.totalorder %s47, %s50
      %p59 = scmp.eq.s32.totalorder %s42, 1
      %p60 = por %p58, %p59
      %p61 = scmp.ne.s32.totalorder %s50, %s51
      %p62 = scmp.eq.s32.totalorder %s42, 0
      %p63 = por %p61, %p62
      %p64 = scmp.ne.s32.totalorder %s50, %s51
      %p65 = scmp.eq.s32.totalorder %s43, 1
      %p66 = por %p64, %p65
      %p68 = scmp.ne.s32.totalorder %s51, %s67
      %p69 = scmp.eq.s32.totalorder %s43, 0
      %p70 = por %p68, %p69
      %s71 = ssub.s32 %s37, %s44
      %p72 = scmp.eq.s32.totalorder %s71, 0
      %s74 = sadd.s32 %s73, 1
      %s75 = scalar_select %p72, %s73, %s74
      %p78 = pneg %p72
      %p79 = scmp.eq.s32.totalorder %s37, 1
      %p80 = por %p78, %p79
      %p81 = scmp.ne.s32.totalorder %s73, %s76
      %p82 = scmp.eq.s32.totalorder %s37, 0
      %p83 = por %p81, %p82
      %p84 = scmp.ne.s32.totalorder %s73, %s76
      %p85 = scmp.eq.s32.totalorder %s42, 1
      %p86 = por %p84, %p85
      %p87 = scmp.ne.s32.totalorder %s76, %s77
      %p88 = scmp.eq.s32.totalorder %s42, 0
      %p89 = por %p87, %p88
      %p90 = scmp.ne.s32.totalorder %s76, %s77
      %p91 = scmp.eq.s32.totalorder %s43, 1
      %p92 = por %p90, %p91
      %p94 = scmp.ne.s32.totalorder %s77, %s93
      %p95 = scmp.eq.s32.totalorder %s43, 0
      %p96 = por %p94, %p95
      %s97 = ssub.s32 %s37, %s44
      %p98 = scmp.eq.s32.totalorder %s97, 0
      %s100 = sadd.s32 %s99, 1
      %s101 = scalar_select %p98, %s99, %s100
      %p104 = pneg %p98
      %p105 = scmp.eq.s32.totalorder %s37, 1
      %p106 = por %p104, %p105
      %p107 = scmp.ne.s32.totalorder %s99, %s102
      %p108 = scmp.eq.s32.totalorder %s37, 0
      %p109 = por %p107, %p108
      %p110 = scmp.ne.s32.totalorder %s99, %s102
      %p111 = scmp.eq.s32.totalorder %s42, 1
      %p112 = por %p110, %p111
      %p113 = scmp.ne.s32.totalorder %s102, %s103
      %p114 = scmp.eq.s32.totalorder %s42, 0
      %p115 = por %p113, %p114
      %p116 = scmp.ne.s32.totalorder %s102, %s103
      %p117 = scmp.eq.s32.totalorder %s43, 1
      %p118 = por %p116, %p117
      %p120 = scmp.ne.s32.totalorder %s103, %s119
      %p121 = scmp.eq.s32.totalorder %s43, 0
      %p122 = por %p120, %p121
      %s124 = sadd.s32 %s123, 1
      %p127 = scmp.eq.s32.totalorder %s37, 1
      %p128 = scmp.ne.s32.totalorder %s123, %s125
      %p129 = scmp.eq.s32.totalorder %s37, 0
      %p130 = por %p128, %p129
      %p131 = scmp.ne.s32.totalorder %s123, %s125
      %p132 = scmp.eq.s32.totalorder %s42, 1
      %p133 = por %p131, %p132
      %p134 = scmp.ne.s32.totalorder %s125, %s126
      %p135 = scmp.eq.s32.totalorder %s42, 0
      %p136 = por %p134, %p135
      %p137 = scmp.ne.s32.totalorder %s125, %s126
      %p138 = scmp.eq.s32.totalorder %s43, 1
      %p139 = por %p137, %p138
      %p141 = scmp.ne.s32.totalorder %s126, %s140
      %p142 = scmp.eq.s32.totalorder %s43, 0
      %p143 = por %p141, %p142
      %s145 = sadd.s32 %s144, 1
      %p148 = scmp.eq.s32.totalorder %s37, 1
      %p149 = scmp.ne.s32.totalorder %s144, %s146
      %p150 = scmp.eq.s32.totalorder %s37, 0
      %p151 = por %p149, %p150
      %p152 = scmp.ne.s32.totalorder %s144, %s146
      %p153 = scmp.eq.s32.totalorder %s42, 1
      %p154 = por %p152, %p153
      %p155 = scmp.ne.s32.totalorder %s146, %s147
      %p156 = scmp.eq.s32.totalorder %s42, 0
      %p157 = por %p155, %p156
      %p158 = scmp.ne.s32.totalorder %s146, %s147
      %p159 = scmp.eq.s32.totalorder %s43, 1
      %p160 = por %p158, %p159
      %p162 = scmp.ne.s32.totalorder %s147, %s161
      %p163 = scmp.eq.s32.totalorder %s43, 0
      %p164 = por %p162, %p163
      %s166 = sadd.s32 %s165, 1
      %p169 = scmp.eq.s32.totalorder %s37, 1
      %p170 = scmp.ne.s32.totalorder %s165, %s167
      %p171 = scmp.eq.s32.totalorder %s37, 0
      %p172 = por %p170, %p171
      %p173 = scmp.ne.s32.totalorder %s165, %s167
      %p174 = scmp.eq.s32.totalorder %s42, 1
      %p175 = por %p173, %p174
      %p176 = scmp.ne.s32.totalorder %s167, %s168
      %p177 = scmp.eq.s32.totalorder %s42, 0
      %p178 = por %p176, %p177
      %p179 = scmp.ne.s32.totalorder %s167, %s168
      %p180 = scmp.eq.s32.totalorder %s43, 1
      %p181 = por %p179, %p180
      %p183 = scmp.ne.s32.totalorder %s168, %s182
      %p184 = scmp.eq.s32.totalorder %s43, 0
      %p185 = por %p183, %p184
      %s187 = sadd.s32 %s186, 1
      %p190 = scmp.eq.s32.totalorder %s37, 1
      %p191 = scmp.ne.s32.totalorder %s186, %s188
      %p192 = scmp.eq.s32.totalorder %s37, 0
      %p193 = por %p191, %p192
      %p194 = scmp.ne.s32.totalorder %s186, %s188
      %p195 = scmp.eq.s32.totalorder %s42, 1
      %p196 = por %p194, %p195
      %p197 = scmp.ne.s32.totalorder %s188, %s189
      %p198 = scmp.eq.s32.totalorder %s42, 0
      %p199 = por %p197, %p198
      %p200 = scmp.ne.s32.totalorder %s188, %s189
      %p201 = scmp.eq.s32.totalorder %s43, 1
      %p202 = por %p200, %p201
      %p204 = scmp.ne.s32.totalorder %s189, %s203
      %p205 = scmp.eq.s32.totalorder %s43, 0
      %p206 = por %p204, %p205
      %s208 = sadd.s32 %s207, 1
      %p211 = scmp.eq.s32.totalorder %s37, 1
      %p212 = scmp.ne.s32.totalorder %s207, %s209
      %p213 = scmp.eq.s32.totalorder %s37, 0
      %p214 = por %p212, %p213
      %p215 = scmp.ne.s32.totalorder %s207, %s209
      %p216 = scmp.eq.s32.totalorder %s42, 1
      %p217 = por %p215, %p216
      %p218 = scmp.ne.s32.totalorder %s209, %s210
      %p219 = scmp.eq.s32.totalorder %s42, 0
      %p220 = por %p218, %p219
      %p221 = scmp.ne.s32.totalorder %s209, %s210
      %p222 = scmp.eq.s32.totalorder %s43, 1
      %p223 = por %p221, %p222
      %p225 = scmp.ne.s32.totalorder %s210, %s224
      %p226 = scmp.eq.s32.totalorder %s43, 0
      %p227 = por %p225, %p226
      %s229 = sadd.s32 %s228, 1
      %p232 = scmp.eq.s32.totalorder %s37, 1
      %p233 = scmp.ne.s32.totalorder %s228, %s230
      %p234 = scmp.eq.s32.totalorder %s37, 0
      %p235 = por %p233, %p234
      %p236 = scmp.ne.s32.totalorder %s228, %s230
      %p237 = scmp.eq.s32.totalorder %s42, 1
      %p238 = por %p236, %p237
      %p239 = scmp.ne.s32.totalorder %s230, %s231
      %p240 = scmp.eq.s32.totalorder %s42, 0
      %p241 = por %p239, %p240
      %p242 = scmp.ne.s32.totalorder %s230, %s231
      %p243 = scmp.eq.s32.totalorder %s43, 1
      %p244 = por %p242, %p243
      %p246 = scmp.ne.s32.totalorder %s231, %s245
      %p247 = scmp.eq.s32.totalorder %s43, 0
      %p248 = por %p246, %p247
      %s250 = sadd.s32 %s249, 1
      %p253 = scmp.eq.s32.totalorder %s37, 1
      %p254 = scmp.ne.s32.totalorder %s249, %s251
      %p255 = scmp.eq.s32.totalorder %s37, 0
      %p256 = por %p254, %p255
      %p257 = scmp.ne.s32.totalorder %s249, %s251
      %p258 = scmp.eq.s32.totalorder %s42, 1
      %p259 = por %p257, %p258
      %p260 = scmp.ne.s32.totalorder %s251, %s252
      %p261 = scmp.eq.s32.totalorder %s42, 0
      %p262 = por %p260, %p261
      %p263 = scmp.ne.s32.totalorder %s251, %s252
      %p264 = scmp.eq.s32.totalorder %s43, 1
      %p265 = por %p263, %p264
      %p267 = scmp.ne.s32.totalorder %s252, %s266
      %p268 = scmp.eq.s32.totalorder %s43, 0
      %p269 = por %p267, %p268
      %s271 = sadd.s32 %s270, 1
      %p274 = scmp.eq.s32.totalorder %s37, 1
      %p275 = scmp.ne.s32.totalorder %s270, %s272
      %p276 = scmp.eq.s32.totalorder %s37, 0
      %p277 = por %p275, %p276
      %p278 = scmp.ne.s32.totalorder %s270, %s272
      %p279 = scmp.eq.s32.totalorder %s42, 1
      %p280 = por %p278, %p279
      %p281 = scmp.ne.s32.totalorder %s272, %s273
      %p282 = scmp.eq.s32.totalorder %s42, 0
      %p283 = por %p281, %p282
      %p284 = scmp.ne.s32.totalorder %s272, %s273
      %p285 = scmp.eq.s32.totalorder %s43, 1
      %p286 = por %p284, %p285
      %p288 = scmp.ne.s32.totalorder %s273, %s287
      %p289 = scmp.eq.s32.totalorder %s43, 0
      %p290 = por %p288, %p289
      %s292 = sadd.s32 %s291, 1
      %p295 = scmp.eq.s32.totalorder %s37, 1
      %p296 = scmp.ne.s32.totalorder %s291, %s293
      %p297 = scmp.eq.s32.totalorder %s37, 0
      %p298 = por %p296, %p297
      %p299 = scmp.ne.s32.totalorder %s291, %s293
      %p300 = scmp.eq.s32.totalorder %s42, 1
      %p301 = por %p299, %p300
      %p302 = scmp.ne.s32.totalorder %s293, %s294
      %p303 = scmp.eq.s32.totalorder %s42, 0
      %p304 = por %p302, %p303
      %p305 = scmp.ne.s32.totalorder %s293, %s294
      %p306 = scmp.eq.s32.totalorder %s43, 1
      %p307 = por %p305, %p306
      %p309 = scmp.ne.s32.totalorder %s294, %s308
      %p310 = scmp.eq.s32.totalorder %s43, 0
      %p311 = por %p309, %p310
      %s313 = sadd.s32 %s312, 1
      %p316 = scmp.eq.s32.totalorder %s37, 1
      %p317 = scmp.ne.s32.totalorder %s312, %s314
      %p318 = scmp.eq.s32.totalorder %s37, 0
      %p319 = por %p317, %p318
      %p320 = scmp.ne.s32.totalorder %s312, %s314
      %p321 = scmp.eq.s32.totalorder %s42, 1
      %p322 = por %p320, %p321
      %p323 = scmp.ne.s32.totalorder %s314, %s315
      %p324 = scmp.eq.s32.totalorder %s42, 0
      %p325 = por %p323, %p324
      %p326 = scmp.ne.s32.totalorder %s314, %s315
      %p327 = scmp.eq.s32.totalorder %s43, 1
      %p328 = por %p326, %p327
      %p330 = scmp.ne.s32.totalorder %s315, %s329
      %p331 = scmp.eq.s32.totalorder %s43, 0
      %p332 = por %p330, %p331
      %s334 = sadd.s32 %s333, 1
      %p337 = scmp.eq.s32.totalorder %s37, 1
      %p338 = scmp.ne.s32.totalorder %s333, %s335
      %p339 = scmp.eq.s32.totalorder %s37, 0
      %p340 = por %p338, %p339
      %p341 = scmp.ne.s32.totalorder %s333, %s335
      %p342 = scmp.eq.s32.totalorder %s42, 1
      %p343 = por %p341, %p342
      %p344 = scmp.ne.s32.totalorder %s335, %s336
      %p345 = scmp.eq.s32.totalorder %s42, 0
      %p346 = por %p344, %p345
      %p347 = scmp.ne.s32.totalorder %s335, %s336
      %p348 = scmp.eq.s32.totalorder %s43, 1
      %p349 = por %p347, %p348
      %p351 = scmp.ne.s32.totalorder %s336, %s350
      %p352 = scmp.eq.s32.totalorder %s43, 0
      %p353 = por %p351, %p352
      %s355 = sadd.s32 %s354, 1
      %p358 = scmp.eq.s32.totalorder %s37, 1
      %p359 = scmp.ne.s32.totalorder %s354, %s356
      %p360 = scmp.eq.s32.totalorder %s37, 0
      %p361 = por %p359, %p360
      %p362 = scmp.ne.s32.totalorder %s354, %s356
      %p363 = scmp.eq.s32.totalorder %s42, 1
      %p364 = por %p362, %p363
      %p365 = scmp.ne.s32.totalorder %s356, %s357
      %p366 = scmp.eq.s32.totalorder %s42, 0
      %p367 = por %p365, %p366
      %p368 = scmp.ne.s32.totalorder %s356, %s357
      %p369 = scmp.eq.s32.totalorder %s43, 1
      %p370 = por %p368, %p369
      %p372 = scmp.ne.s32.totalorder %s357, %s371
      %p373 = scmp.eq.s32.totalorder %s43, 0
      %p374 = por %p372, %p373
      %s376 = sadd.s32 %s375, 1
      %p379 = scmp.eq.s32.totalorder %s37, 1
      %p380 = scmp.ne.s32.totalorder %s375, %s377
      %p381 = scmp.eq.s32.totalorder %s37, 0
      %p382 = por %p380, %p381
      %p383 = scmp.ne.s32.totalorder %s375, %s377
      %p384 = scmp.eq.s32.totalorder %s42, 1
      %p385 = por %p383, %p384
      %p386 = scmp.ne.s32.totalorder %s377, %s378
      %p387 = scmp.eq.s32.totalorder %s42, 0
      %p388 = por %p386, %p387
      %p389 = scmp.ne.s32.totalorder %s377, %s378
      %p390 = scmp.eq.s32.totalorder %s43, 1
      %p391 = por %p389, %p390
      %p393 = scmp.ne.s32.totalorder %s378, %s392
      %p394 = scmp.eq.s32.totalorder %s43, 0
      %p395 = por %p393, %p394
      %s397 = sadd.s32 %s396, 1
      %p400 = scmp.eq.s32.totalorder %s37, 1
      %p401 = scmp.ne.s32.totalorder %s396, %s398
      %p402 = scmp.eq.s32.totalorder %s37, 0
      %p403 = por %p401, %p402
      %p404 = scmp.ne.s32.totalorder %s396, %s398
      %p405 = scmp.eq.s32.totalorder %s42, 1
      %p406 = por %p404, %p405
      %p407 = scmp.ne.s32.totalorder %s398, %s399
      %p408 = scmp.eq.s32.totalorder %s42, 0
      %p409 = por %p407, %p408
      %p410 = scmp.ne.s32.totalorder %s398, %s399
      %p411 = scmp.eq.s32.totalorder %s43, 1
      %p412 = por %p410, %p411
      %p414 = scmp.ne.s32.totalorder %s399, %s413
      %p415 = scmp.eq.s32.totalorder %s43, 0
      %p416 = por %p414, %p415
      %s418 = sadd.s32 %s417, 1
      %p421 = scmp.eq.s32.totalorder %s37, 1
      %p422 = scmp.ne.s32.totalorder %s417, %s419
      %p423 = scmp.eq.s32.totalorder %s37, 0
      %p424 = por %p422, %p423
      %p425 = scmp.ne.s32.totalorder %s417, %s419
      %p426 = scmp.eq.s32.totalorder %s42, 1
      %p427 = por %p425, %p426
      %p428 = scmp.ne.s32.totalorder %s419, %s420
      %p429 = scmp.eq.s32.totalorder %s42, 0
      %p430 = por %p428, %p429
      %p431 = scmp.ne.s32.totalorder %s419, %s420
      %p432 = scmp.eq.s32.totalorder %s43, 1
      %p433 = por %p431, %p432
      %p435 = scmp.ne.s32.totalorder %s420, %s434
      %p436 = scmp.eq.s32.totalorder %s43, 0
      %p437 = por %p435, %p436
      %s439 = sadd.s32 %s438, 1
      %p442 = scmp.eq.s32.totalorder %s37, 1
      %p443 = scmp.ne.s32.totalorder %s438, %s440
      %p444 = scmp.eq.s32.totalorder %s37, 0
      %p445 = por %p443, %p444
      %p446 = scmp.ne.s32.totalorder %s438, %s440
      %p447 = scmp.eq.s32.totalorder %s42, 1
      %p448 = por %p446, %p447
      %p449 = scmp.ne.s32.totalorder %s440, %s441
      %p450 = scmp.eq.s32.totalorder %s42, 0
      %p451 = por %p449, %p450
      %p452 = scmp.ne.s32.totalorder %s440, %s441
      %p453 = scmp.eq.s32.totalorder %s43, 1
      %p454 = por %p452, %p453
      %p456 = scmp.ne.s32.totalorder %s441, %s455
      %p457 = scmp.eq.s32.totalorder %s43, 0
      %p458 = por %p456, %p457
      %s459 = ssub.s32 %s37, %s44
      %p460 = scmp.eq.s32.totalorder %s459, 0
      %s462 = sadd.s32 %s461, 1
      %s463 = scalar_select %p460, %s461, %s462
      %p466 = pneg %p460
      %p467 = scmp.eq.s32.totalorder %s37, 1
      %p468 = por %p466, %p467
      %p469 = scmp.ne.s32.totalorder %s461, %s464
      %p470 = scmp.eq.s32.totalorder %s37, 0
      %p471 = por %p469, %p470
      %p472 = scmp.ne.s32.totalorder %s461, %s464
      %p473 = scmp.eq.s32.totalorder %s42, 1
      %p474 = por %p472, %p473
      %p475 = scmp.ne.s32.totalorder %s464, %s465
      %p476 = scmp.eq.s32.totalorder %s42, 0
      %p477 = por %p475, %p476
      %p478 = scmp.ne.s32.totalorder %s464, %s465
      %p479 = scmp.eq.s32.totalorder %s43, 1
      %p480 = por %p478, %p479
      %p482 = scmp.ne.s32.totalorder %s465, %s481
      %p483 = scmp.eq.s32.totalorder %s43, 0
      %p484 = por %p482, %p483
      %s485 = ssub.s32 %s37, %s44
      %p486 = scmp.eq.s32.totalorder %s485, 0
      %s488 = sadd.s32 %s487, 1
      %s489 = scalar_select %p486, %s487, %s488
      %p492 = pneg %p486
      %p493 = scmp.eq.s32.totalorder %s37, 1
      %p494 = por %p492, %p493
      %p495 = scmp.ne.s32.totalorder %s487, %s490
      %p496 = scmp.eq.s32.totalorder %s37, 0
      %p497 = por %p495, %p496
      %p498 = scmp.ne.s32.totalorder %s487, %s490
      %p499 = scmp.eq.s32.totalorder %s42, 1
      %p500 = por %p498, %p499
      %p501 = scmp.ne.s32.totalorder %s490, %s491
      %p502 = scmp.eq.s32.totalorder %s42, 0
      %p503 = por %p501, %p502
      %p504 = scmp.ne.s32.totalorder %s490, %s491
      %p505 = scmp.eq.s32.totalorder %s43, 1
      %p506 = por %p504, %p505
      %p508 = scmp.ne.s32.totalorder %s491, %s507
      %p509 = scmp.eq.s32.totalorder %s43, 0
      %p510 = por %p508, %p509
      %s511 = ssub.s32 %s37, %s44
      %p512 = scmp.eq.s32.totalorder %s511, 0
      %s514 = sadd.s32 %s513, 1
      %s515 = scalar_select %p512, %s513, %s514
      %p518 = pneg %p512
      %p519 = scmp.eq.s32.totalorder %s37, 1
      %p520 = por %p518, %p519
      %p521 = scmp.ne.s32.totalorder %s513, %s516
      %p522 = scmp.eq.s32.totalorder %s37, 0
      %p523 = por %p521, %p522
      %p524 = scmp.ne.s32.totalorder %s513, %s516
      %p525 = scmp.eq.s32.totalorder %s42, 1
      %p526 = por %p524, %p525
      %p527 = scmp.ne.s32.totalorder %s516, %s517
      %p528 = scmp.eq.s32.totalorder %s42, 0
      %p529 = por %p527, %p528
      %p530 = scmp.ne.s32.totalorder %s516, %s517
      %p531 = scmp.eq.s32.totalorder %s43, 1
      %p532 = por %p530, %p531
      %p534 = scmp.ne.s32.totalorder %s517, %s533
      %p535 = scmp.eq.s32.totalorder %s43, 0
      %p536 = por %p534, %p535
      %p537 = scmp.le.s32.totalorder 1, %s37
      %p538 = scmp.lt.s32.totalorder %s37, 3
      %p539 = pnand %p537, %p538
      %p540 = pneg %p539
      // Predicated region
      $region9: #{tpu_custom_call.1} parent=5 // pred_check
        _
      $region10: #{tpu_custom_call.1} parent=5 // pred_check_branch
        %542 = sbr.rel (%p539) target = $region12
      $region11: #{tpu_custom_call.1} parent=5 // pred_region
        %s543 = ssub.s32 %s37, 1
        // Predicated region
        $region13: #{tpu_custom_call.1} parent=11 // pred_check
          %p544 = pneg %p136
        $region14: #{tpu_custom_call.1} parent=11 // pred_check_branch
          %546 = sbr.rel (%p544) target = $region16
        $region15: #{tpu_custom_call.1} parent=11 // pred_region
          _
        $region16: #{tpu_custom_call.1} parent=11 // pred_fallthru
          _
        // Predicated region
        $region17: #{tpu_custom_call.1} parent=11 // pred_check
          %p547 = pneg %p157
        $region18: #{tpu_custom_call.1} parent=11 // pred_check_branch
          %549 = sbr.rel (%p547) target = $region20
        $region19: #{tpu_custom_call.1} parent=11 // pred_region
          _
        $region20: #{tpu_custom_call.1} parent=11 // pred_fallthru
          _
        // Predicated region
        $region21: #{tpu_custom_call.1} parent=11 // pred_check
          %p550 = pneg %p178
        $region22: #{tpu_custom_call.1} parent=11 // pred_check_branch
          %552 = sbr.rel (%p550) target = $region24
        $region23: #{tpu_custom_call.1} parent=11 // pred_region
          _
        $region24: #{tpu_custom_call.1} parent=11 // pred_fallthru
          _
        // Predicated region
        $region25: #{tpu_custom_call.1} parent=11 // pred_check
          %p553 = pneg %p199
        $region26: #{tpu_custom_call.1} parent=11 // pred_check_branch
          %555 = sbr.rel (%p553) target = $region28
        $region27: #{tpu_custom_call.1} parent=11 // pred_region
          _
        $region28: #{tpu_custom_call.1} parent=11 // pred_fallthru
          _
        // Predicated region
        $region29: #{tpu_custom_call.1} parent=11 // pred_check
          %p556 = pneg %p220
        $region30: #{tpu_custom_call.1} parent=11 // pred_check_branch
          %558 = sbr.rel (%p556) target = $region32
        $region31: #{tpu_custom_call.1} parent=11 // pred_region
          _
        $region32: #{tpu_custom_call.1} parent=11 // pred_fallthru
          _
        // Predicated region
        $region33: #{tpu_custom_call.1} parent=11 // pred_check
          %p559 = pneg %p241
        $region34: #{tpu_custom_call.1} parent=11 // pred_check_branch
          %561 = sbr.rel (%p559) target = $region36
        $region35: #{tpu_custom_call.1} parent=11 // pred_region
          _
        $region36: #{tpu_custom_call.1} parent=11 // pred_fallthru
          _
        // Predicated region
        $region37: #{tpu_custom_call.1} parent=11 // pred_check
          %p562 = pneg %p262
        $region38: #{tpu_custom_call.1} parent=11 // pred_check_branch
          %564 = sbr.rel (%p562) target = $region40
        $region39: #{tpu_custom_call.1} parent=11 // pred_region
          _
        $region40: #{tpu_custom_call.1} parent=11 // pred_fallthru
          _
        // Predicated region
        $region41: #{tpu_custom_call.1} parent=11 // pred_check
          %p565 = pneg %p283
        $region42: #{tpu_custom_call.1} parent=11 // pred_check_branch
          %567 = sbr.rel (%p565) target = $region44
        $region43: #{tpu_custom_call.1} parent=11 // pred_region
          _
        $region44: #{tpu_custom_call.1} parent=11 // pred_fallthru
          _
        // Predicated region
        $region45: #{tpu_custom_call.1} parent=11 // pred_check
          %p568 = pneg %p304
        $region46: #{tpu_custom_call.1} parent=11 // pred_check_branch
          %570 = sbr.rel (%p568) target = $region48
        $region47: #{tpu_custom_call.1} parent=11 // pred_region
          _
        $region48: #{tpu_custom_call.1} parent=11 // pred_fallthru
          _
        // Predicated region
        $region49: #{tpu_custom_call.1} parent=11 // pred_check
          %p571 = pneg %p325
        $region50: #{tpu_custom_call.1} parent=11 // pred_check_branch
          %573 = sbr.rel (%p571) target = $region52
        $region51: #{tpu_custom_call.1} parent=11 // pred_region
          _
        $region52: #{tpu_custom_call.1} parent=11 // pred_fallthru
          _
        // Predicated region
        $region53: #{tpu_custom_call.1} parent=11 // pred_check
          %p574 = pneg %p346
        $region54: #{tpu_custom_call.1} parent=11 // pred_check_branch
          %576 = sbr.rel (%p574) target = $region56
        $region55: #{tpu_custom_call.1} parent=11 // pred_region
          _
        $region56: #{tpu_custom_call.1} parent=11 // pred_fallthru
          _
        // Predicated region
        $region57: #{tpu_custom_call.1} parent=11 // pred_check
          %p577 = pneg %p367
        $region58: #{tpu_custom_call.1} parent=11 // pred_check_branch
          %579 = sbr.rel (%p577) target = $region60
        $region59: #{tpu_custom_call.1} parent=11 // pred_region
          _
        $region60: #{tpu_custom_call.1} parent=11 // pred_fallthru
          _
        // Predicated region
        $region61: #{tpu_custom_call.1} parent=11 // pred_check
          %p580 = pneg %p388
        $region62: #{tpu_custom_call.1} parent=11 // pred_check_branch
          %582 = sbr.rel (%p580) target = $region64
        $region63: #{tpu_custom_call.1} parent=11 // pred_region
          _
        $region64: #{tpu_custom_call.1} parent=11 // pred_fallthru
          _
        // Predicated region
        $region65: #{tpu_custom_call.1} parent=11 // pred_check
          %p583 = pneg %p409
        $region66: #{tpu_custom_call.1} parent=11 // pred_check_branch
          %585 = sbr.rel (%p583) target = $region68
        $region67: #{tpu_custom_call.1} parent=11 // pred_region
          _
        $region68: #{tpu_custom_call.1} parent=11 // pred_fallthru
          _
        // Predicated region
        $region69: #{tpu_custom_call.1} parent=11 // pred_check
          %p586 = pneg %p430
        $region70: #{tpu_custom_call.1} parent=11 // pred_check_branch
          %588 = sbr.rel (%p586) target = $region72
        $region71: #{tpu_custom_call.1} parent=11 // pred_region
          _
        $region72: #{tpu_custom_call.1} parent=11 // pred_fallthru
          _
        // Predicated region
        $region73: #{tpu_custom_call.1} parent=11 // pred_check
          %p589 = pneg %p451
        $region74: #{tpu_custom_call.1} parent=11 // pred_check_branch
          %591 = sbr.rel (%p589) target = $region76
        $region75: #{tpu_custom_call.1} parent=11 // pred_region
          _
        $region76: #{tpu_custom_call.1} parent=11 // pred_fallthru
          _
      $region12: #{tpu_custom_call.1} parent=5 // pred_fallthru
        _
      %p592 = scmp.lt.s32.totalorder %s37, 2
      // Predicated region
      $region77: #{tpu_custom_call.1} parent=5 // pred_check
        %p593 = pneg %p592
      $region78: #{tpu_custom_call.1} parent=5 // pred_check_branch
        %595 = sbr.rel (%p593) target = $region80
      $region79: #{tpu_custom_call.1} parent=5 // pred_region
        // Predicated region
        $region81: #{tpu_custom_call.1} parent=79 // pred_check
          %p596 = pneg %p57
        $region82: #{tpu_custom_call.1} parent=79 // pred_check_branch
          %598 = sbr.rel (%p596) target = $region84
        $region83: #{tpu_custom_call.1} parent=79 // pred_region
          %p599 = scmp.lt.s32.totalorder %s37, 1
          %s600 = scalar_select %p599, %s37, 1
          %s601 = smul.addr %s600, 8
          %s602 = scalar_lea.vmem %s0, %s601
        $region84: #{tpu_custom_call.1} parent=79 // pred_fallthru
          _
        // Predicated region
        $region85: #{tpu_custom_call.1} parent=79 // pred_check
          %p603 = pneg %p83
        $region86: #{tpu_custom_call.1} parent=79 // pred_check_branch
          %605 = sbr.rel (%p603) target = $region88
        $region87: #{tpu_custom_call.1} parent=79 // pred_region
          %p606 = scmp.lt.s32.totalorder %s37, 1
          %s607 = scalar_select %p606, %s37, 1
          %s608 = scalar_lea.vmem %s1, %s607
        $region88: #{tpu_custom_call.1} parent=79 // pred_fallthru
          _
        // Predicated region
        $region89: #{tpu_custom_call.1} parent=79 // pred_check
          %p609 = pneg %p109
        $region90: #{tpu_custom_call.1} parent=79 // pred_check_branch
          %611 = sbr.rel (%p609) target = $region92
        $region91: #{tpu_custom_call.1} parent=79 // pred_region
          %s612 = sand.u32 %s99, 1
          %s613 = scalar_lea.sflag [#allocation4], %s612
          %s614 = sand.u32 %s99, 1
          %s615 = smul.addr %s614, 32
          %s616 = scalar_lea.vmem [#allocation3], %s615
          %s618 = ssub.s32 512, 512
          %619 = vsyncadd %s613, %s618
          %s620 = smul.addr %s37, 4
          %s621 = smul.addr %s620, 128
          %s622 = scalar_lea.hbm %s2, %s621
          %s623 = sshll.u32 %s616, 4
          %s624 = int_to_ptr.vmem [resolvable:$true] %s623
          %629 = dma.hbm_to_vmem [thread:$0]  %s622, 512, %s624, %s613, 128, 128, 8
        $region92: #{tpu_custom_call.1} parent=79 // pred_fallthru
          _
      $region80: #{tpu_custom_call.1} parent=5 // pred_fallthru
        _
      %p630 = scmp.le.s32.totalorder 1, %s37
      %p631 = scmp.lt.s32.totalorder %s37, 3
      %p632 = pnand %p630, %p631
      %p633 = pneg %p632
      // Predicated region
      $region93: #{tpu_custom_call.1} parent=5 // pred_check
        _
      $region94: #{tpu_custom_call.1} parent=5 // pred_check_branch
        %635 = sbr.rel (%p632) target = $region96
      $region95: #{tpu_custom_call.1} parent=5 // pred_region
        %s636 = ssub.s32 %s37, 1
        %s637 = sand.u32 %s102, 1
        %s638 = scalar_lea.sflag [#allocation4], %s637
        %s639 = sand.u32 %s102, 1
        %s640 = smul.addr %s639, 32
        %s641 = scalar_lea.vmem [#allocation3], %s640
        // Predicated region
        $region97: #{tpu_custom_call.1} parent=95 // pred_check
          %p642 = pneg %p115
        $region98: #{tpu_custom_call.1} parent=95 // pred_check_branch
          %644 = sbr.rel (%p642) target = $region100
        $region99: #{tpu_custom_call.1} parent=95 // pred_region
          %645 = dma.done %s638, 512
        $region100: #{tpu_custom_call.1} parent=95 // pred_fallthru
          _
        %p646 = scmp.lt.s32.totalorder %s42, 1
        %s647 = scalar_select %p646, %s42, 1
        %s648 = smul.addr %s647, 8
        %s649 = scalar_lea.vmem %s0, %s648
        %p650 = pneg %p63
        %p651 = pneg %p60
        %p652 = scmp.lt.s32.totalorder %s42, 1
        %s653 = scalar_select %p652, %s42, 1
        %s654 = scalar_lea.vmem %s1, %s653
        %p655 = pneg %p89
        %p656 = pneg %p86
        %s657 = sand.u32 %s102, 1
        %s658 = scalar_lea.sflag [#allocation4], %s657
        %s659 = sand.u32 %s102, 1
        %s660 = smul.addr %s659, 32
        %s661 = scalar_lea.vmem [#allocation3], %s660
        %p662 = pneg %p115
        %p663 = pneg %p112
        %p664 = pneg %p136
        %p665 = pneg %p133
        %p666 = pneg %p157
        %p667 = pneg %p154
        %p668 = pneg %p178
        %p669 = pneg %p175
        %p670 = pneg %p199
        %p671 = pneg %p196
        %p672 = pneg %p220
        %p673 = pneg %p217
        %p674 = pneg %p241
        %p675 = pneg %p238
        %p676 = pneg %p262
        %p677 = pneg %p259
        %p678 = pneg %p283
        %p679 = pneg %p280
        %p680 = pneg %p304
        %p681 = pneg %p301
        %p682 = pneg %p325
        %p683 = pneg %p322
        %p684 = pneg %p346
        %p685 = pneg %p343
        %p686 = pneg %p367
        %p687 = pneg %p364
        %p688 = pneg %p388
        %p689 = pneg %p385
        %p690 = pneg %p409
        %p691 = pneg %p406
        %p692 = pneg %p430
        %p693 = pneg %p427
        %p694 = pneg %p451
        %p695 = pneg %p448
        %p696 = pneg %p477
        %p697 = pneg %p474
        %s698 = sand.u32 %s464, 1
        %s699 = scalar_lea.sflag [#allocation5], %s698
        %s700 = sand.u32 %s464, 1
        %s701 = smul.addr %s700, 8
        %s702 = scalar_lea.vmem [#allocation6], %s701
        %p703 = pneg %p503
        %p704 = pneg %p500
        %s705 = sand.u32 %s42, 1
        %s706 = scalar_lea.sflag [#allocation8], %s705
        %s707 = sand.u32 %s490, 1
        %s708 = smul.addr %s707, 32
        %s709 = scalar_lea.vmem [#allocation7], %s708
        %p710 = pneg %p529
        %p711 = pneg %p526
        %s712 = sand.u32 %s42, 1
        %s713 = scalar_lea.sflag [#allocation8], %s712
        %s714 = sand.u32 %s516, 1
        %s715 = scalar_lea.vmem [#allocation9], %s714
        %p716 = scmp.lt.s32.totalorder %s42, 1
        %s717 = scalar_select %p716, %s42, 1
        %s718 = smul.addr %s717, 8
        %s719 = scalar_lea.vmem %s0, %s718
        %p720 = scmp.lt.s32.totalorder %s42, 1
        %s721 = scalar_select %p720, %s42, 1
        %s722 = scalar_lea.vmem %s1, %s721
        %v724 = vld [vmem:[%s719] sm:$0xff]
        %v725 = vld [vmem:[%s4] sm:$0x1]
        %v726 = vld [vmem:[%s5] sm:$0x1]
        %vm727 = vcmask 261120
        %v728 = vsel %vm727, %v724, 0.0
        %729 = vadd.xlane.f32.xlu0 %v728
        %v730 = vpop.xlane.xlu0 %729
        %v731 = vrcp.pop 32.0
        %v732 = vmul.f32 %v730, %v731
        %v733 = vsub.f32 %v724, %v732
        %v734 = vmul.f32 %v733, %v733
        %v735 = vsel %vm727, %v734, 0.0
        %736 = vadd.xlane.f32.xlu0 %v735
        %v737 = vpop.xlane.xlu0 %736
        %v738 = vmul.f32 %v737, %v731
        %v739 = vadd.f32 %v738, 1e-05
        %v740 = vrsqrt.pop %v739
        %v741 = vmul.f32 %v733, %v740
        %v743 = vlaneseq
        %v744 = vshrl.u32 %v743, 7
        %v745 = vsub.s32 0, %v744
        %v746 = vrot.slane %v725, %v745
        %v748 = vmul.f32 %v741, %v746
        %v750 = vlaneseq
        %v751 = vshrl.u32 %v750, 7
        %v752 = vsub.s32 0, %v751
        %v753 = vrot.slane %v726, %v752
        %v755 = vadd.f32 %v748, %v753
        %v756 = vld [vmem:[%s6] sm:$0x1]
        %v757 = vld [vmem:[%s7] sm:$0x1]
        %v758 = vsel %vm727, %v755, 0.0
        %759 = vadd.xlane.f32.xlu0 %v758
        %v760 = vpop.xlane.xlu0 %759
        %v761 = vmul.f32 %v760, %v731
        %v762 = vsub.f32 %v755, %v761
        %v763 = vmul.f32 %v762, %v762
        %v764 = vsel %vm727, %v763, 0.0
        %765 = vadd.xlane.f32.xlu0 %v764
        %v766 = vpop.xlane.xlu0 %765
        %v767 = vmul.f32 %v766, %v731
        %v768 = vadd.f32 %v767, 1e-05
        %v769 = vrsqrt.pop %v768
        %v770 = vmul.f32 %v762, %v769
        %v772 = vlaneseq
        %v773 = vshrl.u32 %v772, 7
        %v774 = vsub.s32 0, %v773
        %v775 = vrot.slane %v756, %v774
        %v777 = vmul.f32 %v770, %v775
        %v779 = vlaneseq
        %v780 = vshrl.u32 %v779, 7
        %v781 = vsub.s32 0, %v780
        %v782 = vrot.slane %v757, %v781
        %v784 = vadd.f32 %v777, %v782
        %vm785 = vcmask 261127
        %786 = vst.msk [vmem:[%s715 - $0x7] sm:$0x80] %vm785, %v784
        %v787 = vlaneseq
        %v788 = vshrl.u32 %v787, 7
        %vm789 = vcmp.eq.s32.totalorder %v788, 0
        %v790 = vrot.slane %v784, 7
        %v791 = vld [vmem:[%s722] sm:$0x1]
        %v792 = vsel %vm789, 1, 0
        %vm793 = vcmp.eq.s32.totalorder %v792, 1
        %v795 = vlaneseq
        %v796 = vshrl.u32 %v795, 7
        %v797 = vsub.s32 0, %v796
        %v798 = vrot.slane %v791, %v797
        %v800 = vsel %vm793, %v798, %v790
        %v801 = vsub.f32 %v784, %v800
        %v802 = vld [vmem:[%s3] sm:$0x1]
        %v804 = vlaneseq
        %v805 = vshrl.u32 %v804, 7
        %v806 = vsub.s32 0, %v805
        %v807 = vrot.slane %v802, %v806
        %v809 = vmul.f32 %v807, %v801
        %v810 = vadd.f32 %v800, %v809
        %s811 = scalar_lea.vmem %s3, 1
        %v812 = vld [vmem:[%s811] sm:$0x1]
        %v814 = vlaneseq
        %v815 = vshrl.u32 %v814, 7
        %v816 = vsub.s32 0, %v815
        %v817 = vrot.slane %v812, %v816
        %v819 = vmul.f32 %v817, %v801
        %v820 = vadd.f32 %v800, %v819
        %s821 = scalar_lea.vmem %s3, 2
        %v822 = vld [vmem:[%s821] sm:$0x1]
        %v824 = vlaneseq
        %v825 = vshrl.u32 %v824, 7
        %v826 = vsub.s32 0, %v825
        %v827 = vrot.slane %v822, %v826
        %v829 = vmul.f32 %v827, %v801
        %v830 = vadd.f32 %v800, %v829
        %s831 = scalar_lea.vmem %s3, 3
        %v832 = vld [vmem:[%s831] sm:$0x1]
        %v834 = vlaneseq
        %v835 = vshrl.u32 %v834, 7
        %v836 = vsub.s32 0, %v835
        %v837 = vrot.slane %v832, %v836
        %v839 = vmul.f32 %v837, %v801
        %v840 = vadd.f32 %v800, %v839
        %v841 = vpack.c.bf16 %v830, %v830
        %v842 = vld [vmem:[%s8] sm:$0xf]
        %v843 = vld [vmem:[%s8 + $0x4] sm:$0xf]
        %v844 = vld [vmem:[%s8 + $0x8] sm:$0xf]
        %v845 = vld [vmem:[%s8 + $0xc] sm:$0xf]
        %v850 = vunpack.c.l.b16 %v842
        %v851 = vunpack.c.l.b16 %v843
        %v852 = vunpack.c.l.b16 %v844
        %v853 = vunpack.c.l.b16 %v845
        %v854 = vpack.c.b16 %v851, %v850
        %v855 = vpack.c.b16 %v853, %v852
        %v859 = vsel %vm727, %v841, 0
        %861 = vmatprep.subr.bf16.mxu0 0
        %862 = vmatpush1.bf16.msra.mxu0 0
        %863 = vmatprep.subr.bf16.mxu0 0
        %864 = vmatpush1.bf16.msra.mxu0 0
        %865 = vmatprep.subr.bf16.mxu0 0
        %866 = vmatpush1.bf16.msra.mxu0 0
        %867 = vmatprep.subr.bf16.mxu0 0
        %868 = vmatpush1.bf16.msra.mxu0 0
        %869 = vmatprep.subr.bf16.mxu0 0
        %870 = vmatpush1.bf16.msra.mxu0 0
        %871 = vmatprep.subr.bf16.mxu0 0
        %872 = vmatpush1.bf16.msra.mxu0 0
        %873 = vmatprep.subr.bf16.mxu0 0
        %874 = vmatpush1.bf16.msra.mxu0 %v855
        %875 = vmatprep.subr.bf16.mxu0 0
        %876 = vmatpush1.bf16.msra.mxu0 %v854
        %877 = vmatprep.subr.bf16.mxu0 0
        %878 = vmatpush2.bf16.msra.mxu0 0
        %879 = vmatprep.subr.bf16.mxu0 0
        %880 = vmatpush2.bf16.msra.mxu0 0
        %881 = vmatprep.subr.bf16.mxu0 0
        %882 = vmatpush2.bf16.msra.mxu0 0
        %883 = vmatprep.subr.bf16.mxu0 0
        %884 = vmatpush2.bf16.msra.mxu0 0
        %885 = vmatprep.subr.bf16.mxu0 0
        %886 = vmatpush2.bf16.msra.mxu0 0
        %887 = vmatprep.subr.bf16.mxu0 0
        %888 = vmatpush2.bf16.msra.mxu0 0
        %889 = vmatprep.subr.bf16.mxu0 0
        %890 = vmatpush2.bf16.msra.mxu0 0
        %891 = vmatprep.subr.bf16.mxu0 0
        %892 = vmatpush2.bf16.msra.mxu0 0
        %893 = vmatprep.mubr.bf16.mxu0 0
        %894 = vmatmul.mubr.bf16.gmra.mxu0 %v859
        %v895 = vpop.f32.mrf.mxu0
        %v896 = vadd.f32 0.0, %v895
        %v897 = vpop.f32.mrf.mxu0
        %v898 = vpop.f32.mrf.mxu0
        %v899 = vpop.f32.mrf.mxu0
        %900 = vdwg.mxu0
        %v901 = vpack.c.bf16 %v810, %v810
        %v902 = vld [vmem:[%s9] sm:$0xf]
        %v903 = vld [vmem:[%s9 + $0x4] sm:$0xf]
        %v904 = vld [vmem:[%s9 + $0x8] sm:$0xf]
        %v905 = vld [vmem:[%s9 + $0xc] sm:$0xf]
        %v910 = vunpack.c.l.b16 %v902
        %v911 = vunpack.c.l.b16 %v903
        %v912 = vunpack.c.l.b16 %v904
        %v913 = vunpack.c.l.b16 %v905
        %v914 = vpack.c.b16 %v911, %v910
        %v915 = vpack.c.b16 %v913, %v912
        %v919 = vsel %vm727, %v901, 0
        %921 = vmatprep.subr.bf16.mxu0 0
        %922 = vmatpush1.bf16.msra.mxu0 0
        %923 = vmatprep.subr.bf16.mxu0 0
        %924 = vmatpush1.bf16.msra.mxu0 0
        %925 = vmatprep.subr.bf16.mxu0 0
        %926 = vmatpush1.bf16.msra.mxu0 0
        %927 = vmatprep.subr.bf16.mxu0 0
        %928 = vmatpush1.bf16.msra.mxu0 0
        %929 = vmatprep.subr.bf16.mxu0 0
        %930 = vmatpush1.bf16.msra.mxu0 0
        %931 = vmatprep.subr.bf16.mxu0 0
        %932 = vmatpush1.bf16.msra.mxu0 0
        %933 = vmatprep.subr.bf16.mxu0 0
        %934 = vmatpush1.bf16.msra.mxu0 %v915
        %935 = vmatprep.subr.bf16.mxu0 0
        %936 = vmatpush1.bf16.msra.mxu0 %v914
        %937 = vmatprep.subr.bf16.mxu0 0
        %938 = vmatpush2.bf16.msra.mxu0 0
        %939 = vmatprep.subr.bf16.mxu0 0
        %940 = vmatpush2.bf16.msra.mxu0 0
        %941 = vmatprep.subr.bf16.mxu0 0
        %942 = vmatpush2.bf16.msra.mxu0 0
        %943 = vmatprep.subr.bf16.mxu0 0
        %944 = vmatpush2.bf16.msra.mxu0 0
        %945 = vmatprep.subr.bf16.mxu0 0
        %946 = vmatpush2.bf16.msra.mxu0 0
        %947 = vmatprep.subr.bf16.mxu0 0
        %948 = vmatpush2.bf16.msra.mxu0 0
        %949 = vmatprep.subr.bf16.mxu0 0
        %950 = vmatpush2.bf16.msra.mxu0 0
        %951 = vmatprep.subr.bf16.mxu0 0
        %952 = vmatpush2.bf16.msra.mxu0 0
        %953 = vmatprep.mubr.bf16.mxu0 0
        %954 = vmatmul.mubr.bf16.gmra.mxu0 %v919
        %v955 = vpop.f32.mrf.mxu0
        %v956 = vadd.f32 0.0, %v955
        %v957 = vpop.f32.mrf.mxu0
        %v958 = vpop.f32.mrf.mxu0
        %v959 = vpop.f32.mrf.mxu0
        %960 = vdwg.mxu0
        %v961 = vpack.c.bf16 %v820, %v820
        %v962 = vld [vmem:[%s10] sm:$0xf]
        %v963 = vld [vmem:[%s10 + $0x4] sm:$0xf]
        %v964 = vld [vmem:[%s10 + $0x8] sm:$0xf]
        %v965 = vld [vmem:[%s10 + $0xc] sm:$0xf]
        %v970 = vunpack.c.l.b16 %v962
        %v971 = vunpack.c.l.b16 %v963
        %v972 = vunpack.c.l.b16 %v964
        %v973 = vunpack.c.l.b16 %v965
        %v974 = vpack.c.b16 %v971, %v970
        %v975 = vpack.c.b16 %v973, %v972
        %v979 = vsel %vm727, %v961, 0
        %981 = vmatprep.subr.bf16.mxu0 0
        %982 = vmatpush1.bf16.msra.mxu0 0
        %983 = vmatprep.subr.bf16.mxu0 0
        %984 = vmatpush1.bf16.msra.mxu0 0
        %985 = vmatprep.subr.bf16.mxu0 0
        %986 = vmatpush1.bf16.msra.mxu0 0
        %987 = vmatprep.subr.bf16.mxu0 0
        %988 = vmatpush1.bf16.msra.mxu0 0
        %989 = vmatprep.subr.bf16.mxu0 0
        %990 = vmatpush1.bf16.msra.mxu0 0
        %991 = vmatprep.subr.bf16.mxu0 0
        %992 = vmatpush1.bf16.msra.mxu0 0
        %993 = vmatprep.subr.bf16.mxu0 0
        %994 = vmatpush1.bf16.msra.mxu0 %v975
        %995 = vmatprep.subr.bf16.mxu0 0
        %996 = vmatpush1.bf16.msra.mxu0 %v974
        %997 = vmatprep.subr.bf16.mxu0 0
        %998 = vmatpush2.bf16.msra.mxu0 0
        %999 = vmatprep.subr.bf16.mxu0 0
        %1000 = vmatpush2.bf16.msra.mxu0 0
        %1001 = vmatprep.subr.bf16.mxu0 0
        %1002 = vmatpush2.bf16.msra.mxu0 0
        %1003 = vmatprep.subr.bf16.mxu0 0
        %1004 = vmatpush2.bf16.msra.mxu0 0
        %1005 = vmatprep.subr.bf16.mxu0 0
        %1006 = vmatpush2.bf16.msra.mxu0 0
        %1007 = vmatprep.subr.bf16.mxu0 0
        %1008 = vmatpush2.bf16.msra.mxu0 0
        %1009 = vmatprep.subr.bf16.mxu0 0
        %1010 = vmatpush2.bf16.msra.mxu0 0
        %1011 = vmatprep.subr.bf16.mxu0 0
        %1012 = vmatpush2.bf16.msra.mxu0 0
        %1013 = vmatprep.mubr.bf16.mxu0 0
        %1014 = vmatmul.mubr.bf16.gmra.mxu0 %v979
        %v1015 = vpop.f32.mrf.mxu0
        %v1016 = vadd.f32 0.0, %v1015
        %v1017 = vpop.f32.mrf.mxu0
        %v1018 = vpop.f32.mrf.mxu0
        %v1019 = vpop.f32.mrf.mxu0
        %1020 = vdwg.mxu0
        %v1021 = vpack.c.bf16 %v840, %v840
        %v1022 = vld [vmem:[%s11] sm:$0xf]
        %v1023 = vld [vmem:[%s11 + $0x4] sm:$0xf]
        %v1024 = vld [vmem:[%s11 + $0x8] sm:$0xf]
        %v1025 = vld [vmem:[%s11 + $0xc] sm:$0xf]
        %v1030 = vunpack.c.l.b16 %v1022
        %v1031 = vunpack.c.l.b16 %v1023
        %v1032 = vunpack.c.l.b16 %v1024
        %v1033 = vunpack.c.l.b16 %v1025
        %v1034 = vpack.c.b16 %v1031, %v1030
        %v1035 = vpack.c.b16 %v1033, %v1032
        %v1039 = vsel %vm727, %v1021, 0
        %1041 = vmatprep.subr.bf16.mxu0 0
        %1042 = vmatpush1.bf16.msra.mxu0 0
        %1043 = vmatprep.subr.bf16.mxu0 0
        %1044 = vmatpush1.bf16.msra.mxu0 0
        %1045 = vmatprep.subr.bf16.mxu0 0
        %1046 = vmatpush1.bf16.msra.mxu0 0
        %1047 = vmatprep.subr.bf16.mxu0 0
        %1048 = vmatpush1.bf16.msra.mxu0 0
        %1049 = vmatprep.subr.bf16.mxu0 0
        %1050 = vmatpush1.bf16.msra.mxu0 0
        %1051 = vmatprep.subr.bf16.mxu0 0
        %1052 = vmatpush1.bf16.msra.mxu0 0
        %1053 = vmatprep.subr.bf16.mxu0 0
        %1054 = vmatpush1.bf16.msra.mxu0 %v1035
        %1055 = vmatprep.subr.bf16.mxu0 0
        %1056 = vmatpush1.bf16.msra.mxu0 %v1034
        %1057 = vmatprep.subr.bf16.mxu0 0
        %1058 = vmatpush2.bf16.msra.mxu0 0
        %1059 = vmatprep.subr.bf16.mxu0 0
        %1060 = vmatpush2.bf16.msra.mxu0 0
        %1061 = vmatprep.subr.bf16.mxu0 0
        %1062 = vmatpush2.bf16.msra.mxu0 0
        %1063 = vmatprep.subr.bf16.mxu0 0
        %1064 = vmatpush2.bf16.msra.mxu0 0
        %1065 = vmatprep.subr.bf16.mxu0 0
        %1066 = vmatpush2.bf16.msra.mxu0 0
        %1067 = vmatprep.subr.bf16.mxu0 0
        %1068 = vmatpush2.bf16.msra.mxu0 0
        %1069 = vmatprep.subr.bf16.mxu0 0
        %1070 = vmatpush2.bf16.msra.mxu0 0
        %1071 = vmatprep.subr.bf16.mxu0 0
        %1072 = vmatpush2.bf16.msra.mxu0 0
        %1073 = vmatprep.mubr.bf16.mxu0 0
        %1074 = vmatmul.mubr.bf16.gmra.mxu0 %v1039
        %v1075 = vpop.f32.mrf.mxu0
        %v1076 = vadd.f32 0.0, %v1075
        %v1077 = vpop.f32.mrf.mxu0
        %v1078 = vpop.f32.mrf.mxu0
        %v1079 = vpop.f32.mrf.mxu0
        %1080 = vdwg.mxu0
        %v1081 = vxor.u32 %v1076, 2147483648
        %v1082 = vmul.f32 %v1081, 1.442695
        %v1083 = vpow.pop %v1082
        %v1084 = vadd.f32 %v1083, 1.0
        %v1085 = vrcp.pop %v1084
        %v1086 = vmul.f32 1.0, %v1085
        %v1087 = vmul.f32 %v1076, %v1086
        %v1088 = vpack.c.bf16 %v896, %v896
        %v1089 = vpack.c.bf16 %v1016, %v1016
        %v1090 = vld [vmem:[%s15] sm:$0xff]
        %v1091 = vld [vmem:[%s16] sm:$0xff]
        %v1092 = vld [vmem:[%s17] sm:$0xff]
        %v1093 = vld [vmem:[%s18] sm:$0x1]
        %v1094 = vld [vmem:[%s641] sm:$0xff]
        %v1095 = vld [vmem:[%s641 + $0x8] sm:$0xff]
        %v1096 = vpack.c.bf16 %v956, %v956
        %vm1097 = vcmask 130048
        %v1099 = vsel %vm1097, %v1088, 0
        %v1102 = vsel %vm1097, %v1096, 0
        %1104 = vmatprep.subr.bf16.mxu0 0
        %1105 = vmatpush1.bf16.xpose.msra.mxu0 0
        %1106 = vmatprep.subr.bf16.mxu0 0
        %1107 = vmatpush1.bf16.xpose.msra.mxu0 0
        %1108 = vmatprep.subr.bf16.mxu0 0
        %1109 = vmatpush1.bf16.xpose.msra.mxu0 0
        %1110 = vmatprep.subr.bf16.mxu0 0
        %1111 = vmatpush1.bf16.xpose.msra.mxu0 0
        %1112 = vmatprep.subr.bf16.mxu0 0
        %1113 = vmatpush1.bf16.xpose.msra.mxu0 0
        %1114 = vmatprep.subr.bf16.mxu0 0
        %1115 = vmatpush1.bf16.xpose.msra.mxu0 0
        %1116 = vmatprep.subr.bf16.mxu0 0
        %1117 = vmatpush1.bf16.xpose.msra.mxu0 0
        %1118 = vmatprep.subr.bf16.mxu0 0
        %1119 = vmatpush1.bf16.xpose.msra.mxu0 %v1102
        %1120 = vmatprep.subr.bf16.mxu0 0
        %1121 = vmatpush2.bf16.xpose.msra.mxu0 0
        %1122 = vmatprep.subr.bf16.mxu0 0
        %1123 = vmatpush2.bf16.xpose.msra.mxu0 0
        %1124 = vmatprep.subr.bf16.mxu0 0
        %1125 = vmatpush2.bf16.xpose.msra.mxu0 0
        %1126 = vmatprep.subr.bf16.mxu0 0
        %1127 = vmatpush2.bf16.xpose.msra.mxu0 0
        %1128 = vmatprep.subr.bf16.mxu0 0
        %1129 = vmatpush2.bf16.xpose.msra.mxu0 0
        %1130 = vmatprep.subr.bf16.mxu0 0
        %1131 = vmatpush2.bf16.xpose.msra.mxu0 0
        %1132 = vmatprep.subr.bf16.mxu0 0
        %1133 = vmatpush2.bf16.xpose.msra.mxu0 0
        %1134 = vmatprep.subr.bf16.mxu0 0
        %1135 = vmatpush2.bf16.xpose.msra.mxu0 0
        %1136 = vmatprep.mubr.bf16.mxu0 0
        %1137 = vmatmul.mubr.bf16.gmra.mxu0 %v1099
        %v1138 = vpop.f32.mrf.mxu0
        %v1139 = vadd.f32 0.0, %v1138
        %v1140 = vpop.f32.mrf.mxu0
        %v1141 = vpop.f32.mrf.mxu0
        %v1142 = vpop.f32.mrf.mxu0
        %1143 = vdwg.mxu0
        %v1144 = vmul.f32 %v1139, %v1090
        %v1145 = vpack.c.bf16 %v1144, %v1144
        %v1146 = vpack.c.bf16 %v1095, %v1094
        %1147 = vmatprep.subr.bf16.mxu0 0
        %1148 = vmatpush1.bf16.msra.mxu0 0
        %1149 = vmatprep.subr.bf16.mxu0 0
        %1150 = vmatpush1.bf16.msra.mxu0 0
        %1151 = vmatprep.subr.bf16.mxu0 0
        %1152 = vmatpush1.bf16.msra.mxu0 0
        %1153 = vmatprep.subr.bf16.mxu0 0
        %1154 = vmatpush1.bf16.msra.mxu0 0
        %1155 = vmatprep.subr.bf16.mxu0 0
        %1156 = vmatpush1.bf16.msra.mxu0 0
        %1157 = vmatprep.subr.bf16.mxu0 0
        %1158 = vmatpush1.bf16.msra.mxu0 0
        %1159 = vmatprep.subr.bf16.mxu0 0
        %1160 = vmatpush1.bf16.msra.mxu0 0
        %1161 = vmatprep.subr.bf16.mxu0 0
        %1162 = vmatpush1.bf16.msra.mxu0 %v1146
        %1163 = vmatprep.subr.bf16.mxu0 0
        %1164 = vmatpush2.bf16.msra.mxu0 0
        %1165 = vmatprep.subr.bf16.mxu0 0
        %1166 = vmatpush2.bf16.msra.mxu0 0
        %1167 = vmatprep.subr.bf16.mxu0 0
        %1168 = vmatpush2.bf16.msra.mxu0 0
        %1169 = vmatprep.subr.bf16.mxu0 0
        %1170 = vmatpush2.bf16.msra.mxu0 0
        %1171 = vmatprep.subr.bf16.mxu0 0
        %1172 = vmatpush2.bf16.msra.mxu0 0
        %1173 = vmatprep.subr.bf16.mxu0 0
        %1174 = vmatpush2.bf16.msra.mxu0 0
        %1175 = vmatprep.subr.bf16.mxu0 0
        %1176 = vmatpush2.bf16.msra.mxu0 0
        %1177 = vmatprep.subr.bf16.mxu0 0
        %1178 = vmatpush2.bf16.msra.mxu0 0
        %1179 = vmatprep.mubr.bf16.mxu0 0
        %1180 = vmatmul.mubr.bf16.gmra.mxu0 %v1099
        %v1181 = vpop.f32.mrf.mxu0
        %v1182 = vadd.f32 0.0, %v1181
        %v1183 = vpop.f32.mrf.mxu0
        %v1184 = vpop.f32.mrf.mxu0
        %v1185 = vpop.f32.mrf.mxu0
        %1186 = vdwg.mxu0
        %1188 = vset.pattern.permute.xlu0 0
        %1189 = vperm.xlu0 %1188, %v1092
        %v1190 = vpop.permute.xlu0 %1189
        %v1192 = vmul.f32 %v1182, %v1190
        %vm1193 = vcmask 64512
        %v1195 = vsel %vm1193, %v1145, 0
        %vm1197 = vcmask 1043456
        %v1199 = vsel %vm1197, %v1089, 0
        %1201 = vmatprep.subr.bf16.mxu0 0
        %1202 = vmatpush1.bf16.msra.mxu0 0
        %1203 = vmatprep.subr.bf16.mxu0 0
        %1204 = vmatpush1.bf16.msra.mxu0 0
        %1205 = vmatprep.subr.bf16.mxu0 0
        %1206 = vmatpush1.bf16.msra.mxu0 0
        %1207 = vmatprep.subr.bf16.mxu0 0
        %1208 = vmatpush1.bf16.msra.mxu0 0
        %1209 = vmatprep.subr.bf16.mxu0 0
        %1210 = vmatpush1.bf16.msra.mxu0 0
        %1211 = vmatprep.subr.bf16.mxu0 0
        %1212 = vmatpush1.bf16.msra.mxu0 0
        %1213 = vmatprep.subr.bf16.mxu0 0
        %1214 = vmatpush1.bf16.msra.mxu0 0
        %1215 = vmatprep.subr.bf16.mxu0 0
        %1216 = vmatpush1.bf16.msra.mxu0 %v1199
        %1217 = vmatprep.subr.bf16.mxu0 0
        %1218 = vmatpush2.bf16.msra.mxu0 0
        %1219 = vmatprep.subr.bf16.mxu0 0
        %1220 = vmatpush2.bf16.msra.mxu0 0
        %1221 = vmatprep.subr.bf16.mxu0 0
        %1222 = vmatpush2.bf16.msra.mxu0 0
        %1223 = vmatprep.subr.bf16.mxu0 0
        %1224 = vmatpush2.bf16.msra.mxu0 0
        %1225 = vmatprep.subr.bf16.mxu0 0
        %1226 = vmatpush2.bf16.msra.mxu0 0
        %1227 = vmatprep.subr.bf16.mxu0 0
        %1228 = vmatpush2.bf16.msra.mxu0 0
        %1229 = vmatprep.subr.bf16.mxu0 0
        %1230 = vmatpush2.bf16.msra.mxu0 0
        %1231 = vmatprep.subr.bf16.mxu0 0
        %1232 = vmatpush2.bf16.msra.mxu0 0
        %1233 = vmatprep.mubr.bf16.mxu0 0
        %1234 = vmatmul.mubr.bf16.gmra.mxu0 %v1195
        %v1235 = vpop.f32.mrf.mxu0
        %v1236 = vadd.f32 %v1192, %v1235
        %v1237 = vpop.f32.mrf.mxu0
        %v1238 = vpop.f32.mrf.mxu0
        %v1239 = vpop.f32.mrf.mxu0
        %1240 = vdwg.mxu0
        %v1242 = vlaneseq
        %v1243 = vshrl.u32 %v1242, 7
        %v1244 = vsub.s32 0, %v1243
        %v1245 = vrot.slane %v1093, %v1244
        %1246 = vset.pattern.permute.xlu0 0
        %1247 = vperm.xlu0 %1246, %v1245
        %v1248 = vpop.permute.xlu0 %1247
        %v1250 = vmul.f32 %v1248, %v1094
        %v1251 = vmul.f32 %v1248, %v1095
        %1253 = vset.pattern.permute.xlu0 0
        %1254 = vperm.xlu0 %1253, %v1091
        %v1255 = vpop.permute.xlu0 %1254
        %v1257 = vmul.f32 %v956, %v1255
        %v1258 = vpack.c.bf16 %v1257, %v1257
        %1259 = vxpose.xlu0.c.b16.start [1/8] %v1258, 128
        %1260 = vxpose.xlu0.c.b16.cont [2/8] 0, 128
        %1261 = vxpose.xlu0.c.b16.cont [3/8] 0, 128
        %1262 = vxpose.xlu0.c.b16.cont [4/8] 0, 128
        %1263 = vxpose.xlu0.c.b16.cont [5/8] 0, 128
        %1264 = vxpose.xlu0.c.b16.cont [6/8] 0, 128
        %1265 = vxpose.xlu0.c.b16.cont [7/8] 0, 128
        %1266 = vxpose.xlu0.c.b16.end [8/8] 0, 128
        %v1267 = vpop.trf.xlu0
        %v1268 = vpop.trf.xlu0
        %v1269 = vpop.trf.xlu0
        %v1270 = vpop.trf.xlu0
        %v1271 = vpop.trf.xlu0
        %v1272 = vpop.trf.xlu0
        %v1273 = vpop.trf.xlu0
        %v1274 = vpop.trf.xlu0
        %v1276 = vsel %vm1193, %v1267, 0
        %1278 = vmatprep.subr.bf16.mxu0 0
        %1279 = vmatpush1.bf16.msra.mxu0 0
        %1280 = vmatprep.subr.bf16.mxu0 0
        %1281 = vmatpush1.bf16.msra.mxu0 0
        %1282 = vmatprep.subr.bf16.mxu0 0
        %1283 = vmatpush1.bf16.msra.mxu0 0
        %1284 = vmatprep.subr.bf16.mxu0 0
        %1285 = vmatpush1.bf16.msra.mxu0 0
        %1286 = vmatprep.subr.bf16.mxu0 0
        %1287 = vmatpush1.bf16.msra.mxu0 0
        %1288 = vmatprep.subr.bf16.mxu0 0
        %1289 = vmatpush1.bf16.msra.mxu0 0
        %1290 = vmatprep.subr.bf16.mxu0 0
        %1291 = vmatpush1.bf16.msra.mxu0 0
        %1292 = vmatprep.subr.bf16.mxu0 0
        %1293 = vmatpush1.bf16.msra.mxu0 %v1199
        %1294 = vmatprep.subr.bf16.mxu0 0
        %1295 = vmatpush2.bf16.msra.mxu0 0
        %1296 = vmatprep.subr.bf16.mxu0 0
        %1297 = vmatpush2.bf16.msra.mxu0 0
        %1298 = vmatprep.subr.bf16.mxu0 0
        %1299 = vmatpush2.bf16.msra.mxu0 0
        %1300 = vmatprep.subr.bf16.mxu0 0
        %1301 = vmatpush2.bf16.msra.mxu0 0
        %1302 = vmatprep.subr.bf16.mxu0 0
        %1303 = vmatpush2.bf16.msra.mxu0 0
        %1304 = vmatprep.subr.bf16.mxu0 0
        %1305 = vmatpush2.bf16.msra.mxu0 0
        %1306 = vmatprep.subr.bf16.mxu0 0
        %1307 = vmatpush2.bf16.msra.mxu0 0
        %1308 = vmatprep.subr.bf16.mxu0 0
        %1309 = vmatpush2.bf16.msra.mxu0 0
        %1310 = vmatprep.mubr.bf16.mxu0 0
        %1311 = vmatmul.mubr.bf16.gmra.mxu0 %v1276
        %v1312 = vpop.f32.mrf.mxu0
        %v1313 = vadd.f32 0.0, %v1312
        %v1314 = vpop.f32.mrf.mxu0
        %v1315 = vpop.f32.mrf.mxu0
        %v1316 = vadd.f32 0.0, %v1315
        %v1317 = vpop.f32.mrf.mxu0
        %1318 = vdwg.mxu0
        %v1319 = vadd.f32 %v1250, %v1313
        %v1320 = vadd.f32 %v1251, %v1316
        %1321 = vst.msk [vmem:[%s709] sm:$0xff] %vm1097, %v1319
        %1322 = vst.msk [vmem:[%s709 + $0x8] sm:$0xff] %vm1097, %v1320
        %v1323 = vmul.f32 %v1236, 0.125
        %v1324 = vsel %vm1097, %v1323, 0.0
        %1325 = vadd.xlane.f32.xlu0 %v1324
        %v1326 = vpop.xlane.xlu0 %1325
        %v1327 = vrcp.pop 16.0
        %v1328 = vmul.f32 %v1326, %v1327
        %v1329 = vsub.f32 %v1323, %v1328
        %v1330 = vmul.f32 %v1329, %v1329
        %v1331 = vsel %vm1097, %v1330, 0.0
        %1332 = vadd.xlane.f32.xlu0 %v1331
        %v1333 = vpop.xlane.xlu0 %1332
        %v1334 = vmul.f32 %v1333, %v1327
        %v1335 = vadd.f32 %v1334, 1e-05
        %v1336 = vrsqrt.pop %v1335
        %v1337 = vmul.f32 %v1329, %v1336
        %v1338 = vld [vmem:[%s13] sm:$0x1]
        %v1340 = vlaneseq
        %v1341 = vshrl.u32 %v1340, 7
        %v1342 = vsub.s32 0, %v1341
        %v1343 = vrot.slane %v1338, %v1342
        %v1345 = vmul.f32 %v1337, %v1343
        %v1346 = vld [vmem:[%s14] sm:$0x1]
        %v1348 = vlaneseq
        %v1349 = vshrl.u32 %v1348, 7
        %v1350 = vsub.s32 0, %v1349
        %v1351 = vrot.slane %v1346, %v1350
        %v1353 = vadd.f32 %v1345, %v1351
        %v1354 = vmul.f32 %v1353, %v1087
        %1355 = vst.msk [vmem:[#allocation2] sm:$0xff] %vm1097, %v1354
        %s1356 = scalar_lea.vmem %s15, 8
        %v1357 = vld [vmem:[%s1356] sm:$0xff]
        %v1358 = vld [vmem:[%s16] sm:$0xff]
        %v1359 = vld [vmem:[%s17] sm:$0xff]
        %v1360 = vld [vmem:[%s18] sm:$0x1]
        %s1361 = scalar_lea.vmem %s641, 16 [#allocation3]
        %v1362 = vld [vmem:[%s1361] sm:$0xff]
        %v1363 = vld [vmem:[%s1361 + $0x8] sm:$0xff]
        %1365 = vrot.lane.b32.xlu0 %v1088, 112
        %v1366 = vpop.permute.xlu0 %1365
        %1368 = vrot.lane.b32.xlu0 %v1096, 112
        %v1369 = vpop.permute.xlu0 %1368
        %v1371 = vsel %vm1097, %v1366, 0
        %v1374 = vsel %vm1097, %v1369, 0
        %1376 = vmatprep.subr.bf16.mxu0 0
        %1377 = vmatpush1.bf16.xpose.msra.mxu0 0
        %1378 = vmatprep.subr.bf16.mxu0 0
        %1379 = vmatpush1.bf16.xpose.msra.mxu0 0
        %1380 = vmatprep.subr.bf16.mxu0 0
        %1381 = vmatpush1.bf16.xpose.msra.mxu0 0
        %1382 = vmatprep.subr.bf16.mxu0 0
        %1383 = vmatpush1.bf16.xpose.msra.mxu0 0
        %1384 = vmatprep.subr.bf16.mxu0 0
        %1385 = vmatpush1.bf16.xpose.msra.mxu0 0
        %1386 = vmatprep.subr.bf16.mxu0 0
        %1387 = vmatpush1.bf16.xpose.msra.mxu0 0
        %1388 = vmatprep.subr.bf16.mxu0 0
        %1389 = vmatpush1.bf16.xpose.msra.mxu0 0
        %1390 = vmatprep.subr.bf16.mxu0 0
        %1391 = vmatpush1.bf16.xpose.msra.mxu0 %v1374
        %1392 = vmatprep.subr.bf16.mxu0 0
        %1393 = vmatpush2.bf16.xpose.msra.mxu0 0
        %1394 = vmatprep.subr.bf16.mxu0 0
        %1395 = vmatpush2.bf16.xpose.msra.mxu0 0
        %1396 = vmatprep.subr.bf16.mxu0 0
        %1397 = vmatpush2.bf16.xpose.msra.mxu0 0
        %1398 = vmatprep.subr.bf16.mxu0 0
        %1399 = vmatpush2.bf16.xpose.msra.mxu0 0
        %1400 = vmatprep.subr.bf16.mxu0 0
        %1401 = vmatpush2.bf16.xpose.msra.mxu0 0
        %1402 = vmatprep.subr.bf16.mxu0 0
        %1403 = vmatpush2.bf16.xpose.msra.mxu0 0
        %1404 = vmatprep.subr.bf16.mxu0 0
        %1405 = vmatpush2.bf16.xpose.msra.mxu0 0
        %1406 = vmatprep.subr.bf16.mxu0 0
        %1407 = vmatpush2.bf16.xpose.msra.mxu0 0
        %1408 = vmatprep.mubr.bf16.mxu0 0
        %1409 = vmatmul.mubr.bf16.gmra.mxu0 %v1371
        %v1410 = vpop.f32.mrf.mxu0
        %v1411 = vadd.f32 0.0, %v1410
        %v1412 = vpop.f32.mrf.mxu0
        %v1413 = vpop.f32.mrf.mxu0
        %v1414 = vpop.f32.mrf.mxu0
        %1415 = vdwg.mxu0
        %v1416 = vmul.f32 %v1411, %v1357
        %v1417 = vpack.c.bf16 %v1416, %v1416
        %v1418 = vpack.c.bf16 %v1363, %v1362
        %1419 = vmatprep.subr.bf16.mxu0 0
        %1420 = vmatpush1.bf16.msra.mxu0 0
        %1421 = vmatprep.subr.bf16.mxu0 0
        %1422 = vmatpush1.bf16.msra.mxu0 0
        %1423 = vmatprep.subr.bf16.mxu0 0
        %1424 = vmatpush1.bf16.msra.mxu0 0
        %1425 = vmatprep.subr.bf16.mxu0 0
        %1426 = vmatpush1.bf16.msra.mxu0 0
        %1427 = vmatprep.subr.bf16.mxu0 0
        %1428 = vmatpush1.bf16.msra.mxu0 0
        %1429 = vmatprep.subr.bf16.mxu0 0
        %1430 = vmatpush1.bf16.msra.mxu0 0
        %1431 = vmatprep.subr.bf16.mxu0 0
        %1432 = vmatpush1.bf16.msra.mxu0 0
        %1433 = vmatprep.subr.bf16.mxu0 0
        %1434 = vmatpush1.bf16.msra.mxu0 %v1418
        %1435 = vmatprep.subr.bf16.mxu0 0
        %1436 = vmatpush2.bf16.msra.mxu0 0
        %1437 = vmatprep.subr.bf16.mxu0 0
        %1438 = vmatpush2.bf16.msra.mxu0 0
        %1439 = vmatprep.subr.bf16.mxu0 0
        %1440 = vmatpush2.bf16.msra.mxu0 0
        %1441 = vmatprep.subr.bf16.mxu0 0
        %1442 = vmatpush2.bf16.msra.mxu0 0
        %1443 = vmatprep.subr.bf16.mxu0 0
        %1444 = vmatpush2.bf16.msra.mxu0 0
        %1445 = vmatprep.subr.bf16.mxu0 0
        %1446 = vmatpush2.bf16.msra.mxu0 0
        %1447 = vmatprep.subr.bf16.mxu0 0
        %1448 = vmatpush2.bf16.msra.mxu0 0
        %1449 = vmatprep.subr.bf16.mxu0 0
        %1450 = vmatpush2.bf16.msra.mxu0 0
        %1451 = vmatprep.mubr.bf16.mxu0 0
        %1452 = vmatmul.mubr.bf16.gmra.mxu0 %v1371
        %v1453 = vpop.f32.mrf.mxu0
        %v1454 = vadd.f32 0.0, %v1453
        %v1455 = vpop.f32.mrf.mxu0
        %v1456 = vpop.f32.mrf.mxu0
        %v1457 = vpop.f32.mrf.mxu0
        %1458 = vdwg.mxu0
        %1460 = vset.pattern.permute.xlu0 1
        %1461 = vperm.xlu0 %1460, %v1359
        %v1462 = vpop.permute.xlu0 %1461
        %v1464 = vmul.f32 %v1454, %v1462
        %1466 = vrot.lane.b32.xlu0 %v1089, 112
        %v1467 = vpop.permute.xlu0 %1466
        %v1469 = vsel %vm1193, %v1417, 0
        %v1472 = vsel %vm1197, %v1467, 0
        %1474 = vmatprep.subr.bf16.mxu0 0
        %1475 = vmatpush1.bf16.msra.mxu0 0
        %1476 = vmatprep.subr.bf16.mxu0 0
        %1477 = vmatpush1.bf16.msra.mxu0 0
        %1478 = vmatprep.subr.bf16.mxu0 0
        %1479 = vmatpush1.bf16.msra.mxu0 0
        %1480 = vmatprep.subr.bf16.mxu0 0
        %1481 = vmatpush1.bf16.msra.mxu0 0
        %1482 = vmatprep.subr.bf16.mxu0 0
        %1483 = vmatpush1.bf16.msra.mxu0 0
        %1484 = vmatprep.subr.bf16.mxu0 0
        %1485 = vmatpush1.bf16.msra.mxu0 0
        %1486 = vmatprep.subr.bf16.mxu0 0
        %1487 = vmatpush1.bf16.msra.mxu0 0
        %1488 = vmatprep.subr.bf16.mxu0 0
        %1489 = vmatpush1.bf16.msra.mxu0 %v1472
        %1490 = vmatprep.subr.bf16.mxu0 0
        %1491 = vmatpush2.bf16.msra.mxu0 0
        %1492 = vmatprep.subr.bf16.mxu0 0
        %1493 = vmatpush2.bf16.msra.mxu0 0
        %1494 = vmatprep.subr.bf16.mxu0 0
        %1495 = vmatpush2.bf16.msra.mxu0 0
        %1496 = vmatprep.subr.bf16.mxu0 0
        %1497 = vmatpush2.bf16.msra.mxu0 0
        %1498 = vmatprep.subr.bf16.mxu0 0
        %1499 = vmatpush2.bf16.msra.mxu0 0
        %1500 = vmatprep.subr.bf16.mxu0 0
        %1501 = vmatpush2.bf16.msra.mxu0 0
        %1502 = vmatprep.subr.bf16.mxu0 0
        %1503 = vmatpush2.bf16.msra.mxu0 0
        %1504 = vmatprep.subr.bf16.mxu0 0
        %1505 = vmatpush2.bf16.msra.mxu0 0
        %1506 = vmatprep.mubr.bf16.mxu0 0
        %1507 = vmatmul.mubr.bf16.gmra.mxu0 %v1469
        %v1508 = vpop.f32.mrf.mxu0
        %v1509 = vadd.f32 %v1464, %v1508
        %v1510 = vpop.f32.mrf.mxu0
        %v1511 = vpop.f32.mrf.mxu0
        %v1512 = vpop.f32.mrf.mxu0
        %1513 = vdwg.mxu0
        %v1515 = vlaneseq
        %v1516 = vshrl.u32 %v1515, 7
        %v1517 = vsub.s32 0, %v1516
        %v1518 = vrot.slane %v1360, %v1517
        %1519 = vset.pattern.permute.xlu0 1
        %1520 = vperm.xlu0 %1519, %v1518
        %v1521 = vpop.permute.xlu0 %1520
        %v1523 = vmul.f32 %v1521, %v1362
        %v1524 = vmul.f32 %v1521, %v1363
        %1526 = vset.pattern.permute.xlu0 1
        %1527 = vperm.xlu0 %1526, %v1358
        %v1528 = vpop.permute.xlu0 %1527
        %v1530 = vmul.f32 %v956, %v1528
        %v1531 = vpack.c.bf16 %v1530, %v1530
        %1533 = vrot.lane.b32.xlu0 %v1531, 112
        %v1534 = vpop.permute.xlu0 %1533
        %1536 = vxpose.xlu0.c.b16.start [1/8] %v1534, 128
        %1537 = vxpose.xlu0.c.b16.cont [2/8] 0, 128
        %1538 = vxpose.xlu0.c.b16.cont [3/8] 0, 128
        %1539 = vxpose.xlu0.c.b16.cont [4/8] 0, 128
        %1540 = vxpose.xlu0.c.b16.cont [5/8] 0, 128
        %1541 = vxpose.xlu0.c.b16.cont [6/8] 0, 128
        %1542 = vxpose.xlu0.c.b16.cont [7/8] 0, 128
        %1543 = vxpose.xlu0.c.b16.end [8/8] 0, 128
        %v1544 = vpop.trf.xlu0
        %v1545 = vpop.trf.xlu0
        %v1546 = vpop.trf.xlu0
        %v1547 = vpop.trf.xlu0
        %v1548 = vpop.trf.xlu0
        %v1549 = vpop.trf.xlu0
        %v1550 = vpop.trf.xlu0
        %v1551 = vpop.trf.xlu0
        %v1553 = vsel %vm1193, %v1544, 0
        %1555 = vmatprep.subr.bf16.mxu0 0
        %1556 = vmatpush1.bf16.msra.mxu0 0
        %1557 = vmatprep.subr.bf16.mxu0 0
        %1558 = vmatpush1.bf16.msra.mxu0 0
        %1559 = vmatprep.subr.bf16.mxu0 0
        %1560 = vmatpush1.bf16.msra.mxu0 0
        %1561 = vmatprep.subr.bf16.mxu0 0
        %1562 = vmatpush1.bf16.msra.mxu0 0
        %1563 = vmatprep.subr.bf16.mxu0 0
        %1564 = vmatpush1.bf16.msra.mxu0 0
        %1565 = vmatprep.subr.bf16.mxu0 0
        %1566 = vmatpush1.bf16.msra.mxu0 0
        %1567 = vmatprep.subr.bf16.mxu0 0
        %1568 = vmatpush1.bf16.msra.mxu0 0
        %1569 = vmatprep.subr.bf16.mxu0 0
        %1570 = vmatpush1.bf16.msra.mxu0 %v1472
        %1571 = vmatprep.subr.bf16.mxu0 0
        %1572 = vmatpush2.bf16.msra.mxu0 0
        %1573 = vmatprep.subr.bf16.mxu0 0
        %1574 = vmatpush2.bf16.msra.mxu0 0
        %1575 = vmatprep.subr.bf16.mxu0 0
        %1576 = vmatpush2.bf16.msra.mxu0 0
        %1577 = vmatprep.subr.bf16.mxu0 0
        %1578 = vmatpush2.bf16.msra.mxu0 0
        %1579 = vmatprep.subr.bf16.mxu0 0
        %1580 = vmatpush2.bf16.msra.mxu0 0
        %1581 = vmatprep.subr.bf16.mxu0 0
        %1582 = vmatpush2.bf16.msra.mxu0 0
        %1583 = vmatprep.subr.bf16.mxu0 0
        %1584 = vmatpush2.bf16.msra.mxu0 0
        %1585 = vmatprep.subr.bf16.mxu0 0
        %1586 = vmatpush2.bf16.msra.mxu0 0
        %1587 = vmatprep.mubr.bf16.mxu0 0
        %1588 = vmatmul.mubr.bf16.gmra.mxu0 %v1553
        %v1589 = vpop.f32.mrf.mxu0
        %v1590 = vadd.f32 0.0, %v1589
        %v1591 = vpop.f32.mrf.mxu0
        %v1592 = vpop.f32.mrf.mxu0
        %v1593 = vadd.f32 0.0, %v1592
        %v1594 = vpop.f32.mrf.mxu0
        %1595 = vdwg.mxu0
        %v1596 = vadd.f32 %v1523, %v1590
        %v1597 = vadd.f32 %v1524, %v1593
        %s1598 = scalar_lea.vmem %s709, 16 [#allocation7]
        %1599 = vst.msk [vmem:[%s1598] sm:$0xff] %vm1097, %v1596
        %1600 = vst.msk [vmem:[%s1598 + $0x8] sm:$0xff] %vm1097, %v1597
        %v1601 = vmul.f32 %v1509, 0.125
        %v1602 = vsel %vm1097, %v1601, 0.0
        %1603 = vadd.xlane.f32.xlu0 %v1602
        %v1604 = vpop.xlane.xlu0 %1603
        %v1605 = vmul.f32 %v1604, %v1327
        %v1606 = vsub.f32 %v1601, %v1605
        %v1607 = vmul.f32 %v1606, %v1606
        %v1608 = vsel %vm1097, %v1607, 0.0
        %1609 = vadd.xlane.f32.xlu0 %v1608
        %v1610 = vpop.xlane.xlu0 %1609
        %v1611 = vmul.f32 %v1610, %v1327
        %v1612 = vadd.f32 %v1611, 1e-05
        %v1613 = vrsqrt.pop %v1612
        %v1614 = vmul.f32 %v1606, %v1613
        %s1615 = scalar_lea.vmem %s13, 1
        %v1616 = vld [vmem:[%s1615] sm:$0x1]
        %v1618 = vlaneseq
        %v1619 = vshrl.u32 %v1618, 7
        %v1620 = vsub.s32 0, %v1619
        %v1621 = vrot.slane %v1616, %v1620
        %v1623 = vmul.f32 %v1614, %v1621
        %s1624 = scalar_lea.vmem %s14, 1
        %v1625 = vld [vmem:[%s1624] sm:$0x1]
        %v1627 = vlaneseq
        %v1628 = vshrl.u32 %v1627, 7
        %v1629 = vsub.s32 0, %v1628
        %v1630 = vrot.slane %v1625, %v1629
        %v1632 = vadd.f32 %v1623, %v1630
        %1634 = vrot.lane.b32.xlu0 %v1087, 112
        %v1635 = vpop.permute.xlu0 %1634
        %v1637 = vmul.f32 %v1632, %v1635
        %1639 = vrot.lane.b32.xlu0 %v1637, 16
        %v1640 = vpop.permute.xlu0 %1639
        %vm1642 = vcmask 261248
        %1643 = vst.msk [vmem:[#allocation2] sm:$0xff] %vm1642, %v1640
        %v1644 = vld [vmem:[#allocation2] sm:$0xff]
        %v1645 = vpack.c.bf16 %v1644, %v1644
        %v1646 = vld [vmem:[%s12] sm:$0xf]
        %v1647 = vld [vmem:[%s12 + $0x4] sm:$0xf]
        %v1648 = vld [vmem:[%s12 + $0x8] sm:$0xf]
        %v1649 = vld [vmem:[%s12 + $0xc] sm:$0xf]
        %v1654 = vunpack.c.l.b16 %v1646
        %v1655 = vunpack.c.l.b16 %v1647
        %v1656 = vunpack.c.l.b16 %v1648
        %v1657 = vunpack.c.l.b16 %v1649
        %v1658 = vpack.c.b16 %v1655, %v1654
        %v1659 = vpack.c.b16 %v1657, %v1656
        %v1663 = vsel %vm727, %v1645, 0
        %1665 = vmatprep.subr.bf16.mxu0 0
        %1666 = vmatpush1.bf16.msra.mxu0 0
        %1667 = vmatprep.subr.bf16.mxu0 0
        %1668 = vmatpush1.bf16.msra.mxu0 0
        %1669 = vmatprep.subr.bf16.mxu0 0
        %1670 = vmatpush1.bf16.msra.mxu0 0
        %1671 = vmatprep.subr.bf16.mxu0 0
        %1672 = vmatpush1.bf16.msra.mxu0 0
        %1673 = vmatprep.subr.bf16.mxu0 0
        %1674 = vmatpush1.bf16.msra.mxu0 0
        %1675 = vmatprep.subr.bf16.mxu0 0
        %1676 = vmatpush1.bf16.msra.mxu0 0
        %1677 = vmatprep.subr.bf16.mxu0 0
        %1678 = vmatpush1.bf16.msra.mxu0 %v1659
        %1679 = vmatprep.subr.bf16.mxu0 0
        %1680 = vmatpush1.bf16.msra.mxu0 %v1658
        %1681 = vmatprep.subr.bf16.mxu0 0
        %1682 = vmatpush2.bf16.msra.mxu0 0
        %1683 = vmatprep.subr.bf16.mxu0 0
        %1684 = vmatpush2.bf16.msra.mxu0 0
        %1685 = vmatprep.subr.bf16.mxu0 0
        %1686 = vmatpush2.bf16.msra.mxu0 0
        %1687 = vmatprep.subr.bf16.mxu0 0
        %1688 = vmatpush2.bf16.msra.mxu0 0
        %1689 = vmatprep.subr.bf16.mxu0 0
        %1690 = vmatpush2.bf16.msra.mxu0 0
        %1691 = vmatprep.subr.bf16.mxu0 0
        %1692 = vmatpush2.bf16.msra.mxu0 0
        %1693 = vmatprep.subr.bf16.mxu0 0
        %1694 = vmatpush2.bf16.msra.mxu0 0
        %1695 = vmatprep.subr.bf16.mxu0 0
        %1696 = vmatpush2.bf16.msra.mxu0 0
        %1697 = vmatprep.mubr.bf16.mxu0 0
        %1698 = vmatmul.mubr.bf16.gmra.mxu0 %v1663
        %v1699 = vpop.f32.mrf.mxu0
        %v1700 = vadd.f32 0.0, %v1699
        %v1701 = vpop.f32.mrf.mxu0
        %v1702 = vpop.f32.mrf.mxu0
        %v1703 = vpop.f32.mrf.mxu0
        %1704 = vdwg.mxu0
        %v1705 = vadd.f32 %v755, %v1700
        %1706 = vst.msk [vmem:[%s702] sm:$0xff] %vm727, %v1705
        %s1707 = sand.u32 %s464, 1
        %s1708 = scalar_lea.sflag [#allocation5], %s1707
        %s1709 = sand.u32 %s464, 1
        %s1710 = smul.addr %s1709, 8
        %s1711 = scalar_lea.vmem [#allocation6], %s1710
        %s1712 = sand.u32 %s42, 1
        %s1713 = scalar_lea.sflag [#allocation8], %s1712
        %s1714 = sand.u32 %s490, 1
        %s1715 = smul.addr %s1714, 32
        %s1716 = scalar_lea.vmem [#allocation7], %s1715
        %s1717 = sand.u32 %s42, 1
        %s1718 = scalar_lea.sflag [#allocation8], %s1717
        %s1719 = sand.u32 %s516, 1
        %s1720 = scalar_lea.vmem [#allocation9], %s1719
        // Predicated region
        $region101: #{tpu_custom_call.1} parent=95 // pred_check
          %p1721 = pneg %p474
        $region102: #{tpu_custom_call.1} parent=95 // pred_check_branch
          %1723 = sbr.rel (%p1721) target = $region104
        $region103: #{tpu_custom_call.1} parent=95 // pred_region
          %s1725 = ssub.s32 128, 128
          %1726 = vsyncadd %s1708, %s1725
          %s1727 = smul.addr %s42, 128
          %s1728 = scalar_lea.hbm %s19, %s1727
          %s1730 = sshll.u32 %s1711, 4
          %s1731 = int_to_ptr.vmem [resolvable:$true] %s1730
          %1733 = dma.vmem_to_hbm [thread:$0]  %s1731, 128, %s1728, %s1708
        $region104: #{tpu_custom_call.1} parent=95 // pred_fallthru
          _
        // Predicated region
        $region105: #{tpu_custom_call.1} parent=95 // pred_check
          %p1734 = pneg %p500
        $region106: #{tpu_custom_call.1} parent=95 // pred_check_branch
          %1736 = sbr.rel (%p1734) target = $region108
        $region107: #{tpu_custom_call.1} parent=95 // pred_region
          %s1738 = ssub.s32 512, 512
          %1739 = vsyncadd %s1713, %s1738
          %s1740 = smul.addr %s42, 4
          %s1741 = smul.addr %s1740, 128
          %s1742 = scalar_lea.hbm %s20, %s1741
          %s1743 = sshll.u32 %s1716, 4
          %s1744 = int_to_ptr.vmem [resolvable:$true] %s1743
          %1749 = dma.vmem_to_hbm [thread:$0]  %s1744, 512, %s1742, %s1713, 128, 128, 8
        $region108: #{tpu_custom_call.1} parent=95 // pred_fallthru
          _
        // Predicated region
        $region109: #{tpu_custom_call.1} parent=95 // pred_check
          %p1750 = pneg %p526
        $region110: #{tpu_custom_call.1} parent=95 // pred_check_branch
          %1752 = sbr.rel (%p1750) target = $region112
        $region111: #{tpu_custom_call.1} parent=95 // pred_region
          %s1754 = ssub.s32 16, 16
          %1755 = vsyncadd %s1718, %s1754
          %s1756 = smul.addr %s42, 16
          %s1757 = scalar_lea.hbm %s21, %s1756
          %s1759 = sshll.u32 %s1720, 4
          %s1760 = int_to_ptr.vmem [resolvable:$true] %s1759
          %1762 = dma.vmem_to_hbm [thread:$0]  %s1760, 16, %s1757, %s1718
        $region112: #{tpu_custom_call.1} parent=95 // pred_fallthru
          _
      $region96: #{tpu_custom_call.1} parent=5 // pred_fallthru
        _
      %p1763 = scmp.le.s32.totalorder 2, %s37
      // Predicated region
      $region113: #{tpu_custom_call.1} parent=5 // pred_check
        %p1764 = pneg %p1763
      $region114: #{tpu_custom_call.1} parent=5 // pred_check_branch
        %1766 = sbr.rel (%p1764) target = $region116
      $region115: #{tpu_custom_call.1} parent=5 // pred_region
        %s1767 = ssub.s32 %s37, 2
        // Predicated region
        $region117: #{tpu_custom_call.1} parent=115 // pred_check
          %p1768 = pneg %p480
        $region118: #{tpu_custom_call.1} parent=115 // pred_check_branch
          %1770 = sbr.rel (%p1768) target = $region120
        $region119: #{tpu_custom_call.1} parent=115 // pred_region
          %s1771 = sand.u32 %s465, 1
          %s1772 = scalar_lea.sflag [#allocation5], %s1771
          %s1773 = sand.u32 %s465, 1
          %s1774 = smul.addr %s1773, 8
          %s1775 = scalar_lea.vmem [#allocation6], %s1774
          %1776 = dma.done %s1772, 128
        $region120: #{tpu_custom_call.1} parent=115 // pred_fallthru
          _
        // Predicated region
        $region121: #{tpu_custom_call.1} parent=115 // pred_check
          %p1777 = pneg %p506
        $region122: #{tpu_custom_call.1} parent=115 // pred_check_branch
          %1779 = sbr.rel (%p1777) target = $region124
        $region123: #{tpu_custom_call.1} parent=115 // pred_region
          %s1780 = sand.u32 %s43, 1
          %s1781 = scalar_lea.sflag [#allocation8], %s1780
          %s1782 = sand.u32 %s491, 1
          %s1783 = smul.addr %s1782, 32
          %s1784 = scalar_lea.vmem [#allocation7], %s1783
          %1785 = dma.done %s1781, 512
        $region124: #{tpu_custom_call.1} parent=115 // pred_fallthru
          _
        // Predicated region
        $region125: #{tpu_custom_call.1} parent=115 // pred_check
          %p1786 = pneg %p532
        $region126: #{tpu_custom_call.1} parent=115 // pred_check_branch
          %1788 = sbr.rel (%p1786) target = $region128
        $region127: #{tpu_custom_call.1} parent=115 // pred_region
          %s1789 = sand.u32 %s43, 1
          %s1790 = scalar_lea.sflag [#allocation8], %s1789
          %s1791 = sand.u32 %s517, 1
          %s1792 = scalar_lea.vmem [#allocation9], %s1791
          %1793 = dma.done %s1790, 16
        $region128: #{tpu_custom_call.1} parent=115 // pred_fallthru
          _
      $region116: #{tpu_custom_call.1} parent=5 // pred_fallthru
        _
    $region6: #{tpu_custom_call.1} parent=1 // loop_footer
      %s41 = sadd.s32 1, %s37
    $region7: #{tpu_custom_call.1} parent=1 // loop_footer_branch
      %36 = sbr.rel target = $region3
    $region8: #{tpu_custom_call.1} parent=1 // loop_exit
      _
    %1794 = vsyncpa [#allocation4], 1
    %s1795 = scalar_lea.sflag [#allocation4], 1
    %1796 = vsyncpa %s1795, 1
    %1797 = vsyncpa [#allocation5], 1
    %s1798 = scalar_lea.sflag [#allocation5], 1
    %1799 = vsyncpa %s1798, 1
    %1800 = vsyncpa [#allocation8], 1
    %s1801 = scalar_lea.sflag [#allocation8], 1
    %1802 = vsyncpa %s1801, 1

</llo_original>
